<compile_context>
chip_gen: v5e
topology: v5e:2x2
jax: 0.10.0
libtpu: 0.0.40
codegen_flags: <defaults>
</compile_context>

<pallas_src>
import jax
import jax.numpy as jnp
from jax.experimental import pallas as pl
from jax.experimental.pallas import tpu as pltpu

# ---- small, module-consistent configuration -------------------------------
BATCH = 2
SEQ = 8
VOCAB = 50
HIDDEN = 32          # query_hidden_dim of the mini-BERT (CLS embedding size)
NUM_HEADS = 2
HEAD_DIM = HIDDEN // NUM_HEADS
INTER = 64           # BERT FFN intermediate size
NUM_LAYERS = 2
ELEM_DIM = 33        # element_feature_dim (from the module)
ELEM_PAD = 128       # element features zero-padded to a full lane width
FUSION = 128         # fusion_hidden_dim (from the module)
OUT_PAD = 128        # final logit column padded to a lane-dense store
VEC_PAD = 128        # lane width for the packed bias/LN/BN slabs

BS = BATCH * SEQ
_SCALE = 1.0 / float(HEAD_DIM) ** 0.5


# ---------------------------------------------------------------------------
# The one fused kernel
# ---------------------------------------------------------------------------
def _fused_forward_kernel(
    ids_ref, pos_type_ref, attn_bias_ref, elem_ref,
    word_emb_ref, wqkv_ref, wo_ref, wi_ref, wo2_ref, layer_vecs_ref,
    w1c_ref, w1e_ref, w2_ref, w3_ref, vec_ref,
    out_ref, ctx_ref):
    f32 = jnp.float32

    def layernorm(x, g, b, eps=1e-12):
        # one-pass: mean and mean-of-squares are independent reductions
        mu = jnp.mean(x, axis=-1, keepdims=True)
        ms = jnp.mean(x * x, axis=-1, keepdims=True)
        var = ms - mu * mu
        return (x - mu) * jax.lax.rsqrt(var + eps) * g + b

    vecs = vec_ref[...]                                        # (9, 128) slab
    emb_ln_g = vecs[0:1, 0:HIDDEN]
    emb_ln_b = vecs[1:2, 0:HIDDEN]

    # ---- embeddings: gather realized as a one-hot matmul in VMEM ----------
    ids = ids_ref[...]                                          # (BS, 1) int32
    iota = jax.lax.broadcasted_iota(jnp.int32, (BS, VOCAB), 1)
    onehot = (iota == ids).astype(f32)                          # (BS, VOCAB)
    x = jnp.dot(onehot, word_emb_ref[...], preferred_element_type=f32)
    x = x + pos_type_ref[...]                 # + position + token-type(=0) emb
    x = layernorm(x, emb_ln_g, emb_ln_b)

    # precomputed block-diagonal additive attention bias over all B*S keys
    attn_bias = attn_bias_ref[...]                              # (BS, BS)

    # ---- transformer layers (statically unrolled; weights stay resident) --
    for l in range(NUM_LAYERS):
        lv = layer_vecs_ref[l]                                  # (8, 128) slab
        bqkv  = lv[0:1, 0:3 * HIDDEN]
        bo    = lv[1:2, 0:HIDDEN]
        ln1_g = lv[2:3, 0:HIDDEN]
        ln1_b = lv[3:4, 0:HIDDEN]
        bi    = lv[4:5, 0:INTER]
        bo2   = lv[5:6, 0:HIDDEN]
        ln2_g = lv[6:7, 0:HIDDEN]
        ln2_b = lv[7:8, 0:HIDDEN]

        # fused Q|K|V projection: one (BS,32)@(32,96) matmul
        # (1/sqrt(head_dim) already folded into the Q columns at init time)
        qkv = jnp.dot(x, wqkv_ref[l], preferred_element_type=f32) + bqkv
        q = qkv[:, 0 * HIDDEN:1 * HIDDEN]
        k = qkv[:, 1 * HIDDEN:2 * HIDDEN]
        v = qkv[:, 2 * HIDDEN:3 * HIDDEN]

        # Block-diagonal attention: all B*S rows per head in ONE (BS,BS)
        # score matmul; the additive bias kills cross-batch and masked keys.
        for h in range(NUM_HEADS):
            c0 = h * HEAD_DIM
            qh = q[:, c0:c0 + HEAD_DIM]                         # (BS, D)
            kh = k[:, c0:c0 + HEAD_DIM]
            vh = v[:, c0:c0 + HEAD_DIM]
            s = jnp.dot(qh, kh.T, preferred_element_type=f32) + attn_bias
            s_max = jnp.max(s, axis=-1, keepdims=True)
            p = jnp.exp(s - s_max)
            denom = jnp.sum(p, axis=-1, keepdims=True)
            # EUP reciprocal (approx) keeps the divide off the VPU slot.
            p = p * pl.reciprocal(denom, approx=True)
            # per-head context written straight into VMEM scratch (no concat)
            ctx_ref[:, c0:c0 + HEAD_DIM] = jnp.dot(
                p, vh, preferred_element_type=f32)

        attn_out = (jnp.dot(ctx_ref[...], wo_ref[l],
                            preferred_element_type=f32) + bo)
        x = layernorm(x + attn_out, ln1_g, ln1_b)               # residual + LN

        hmid = jnp.dot(x, wi_ref[l], preferred_element_type=f32) + bi
        # GELU (tanh approximation)
        # TODO(synk): HF BERT default is exact erf-GELU; tanh approx differs slightly.
        c = 0.7978845608028654  # sqrt(2/pi)
        hmid = 0.5 * hmid * (1.0 + jnp.tanh(
            c * (hmid + 0.044715 * hmid * hmid * hmid)))
        ffn_out = jnp.dot(hmid, wo2_ref[l], preferred_element_type=f32) + bo2
        x = layernorm(x + ffn_out, ln2_g, ln2_b)                # residual + LN

    # ---- CLS pooling via a one-hot selector matmul (no strided slices) ----
    brow = jax.lax.broadcasted_iota(jnp.int32, (BATCH, BS), 0)
    bcol = jax.lax.broadcasted_iota(jnp.int32, (BATCH, BS), 1)
    sel = (bcol == brow * SEQ).astype(f32)                      # (B, BS)
    cls = jnp.dot(sel, x, preferred_element_type=f32)           # (B, HIDDEN)

    # ---- classifier head ---------------------------------------------------
    b1      = vecs[2:3, :]
    bn_g    = vecs[3:4, :]
    bn_b    = vecs[4:5, :]
    bn_mean = vecs[5:6, :]
    bn_var  = vecs[6:7, :]
    b2      = vecs[7:8, 0:FUSION // 2]
    b3      = vecs[8:9, :]

    # Linear(65 -> 128) split into a CLS block and a zero-padded element block
    h1 = (jnp.dot(cls, w1c_ref[...], preferred_element_type=f32)
          + jnp.dot(elem_ref[...], w1e_ref[...], preferred_element_type=f32)
          + b1)
    # BatchNorm1d in eval mode (running stats); Dropout = identity.
    h1 = (h1 - bn_mean) * jax.lax.rsqrt(bn_var + 1e-5) * bn_g + bn_b
    h1 = jnp.maximum(h1, 0.0)
    # Linear(128 -> 64) + ReLU
    h2 = jnp.dot(h1, w2_ref[...], preferred_element_type=f32) + b2
    h2 = jnp.maximum(h2, 0.0)
    # Linear(64 -> 1), padded to 128 output columns (lane-dense store);
    # only column 0 carries the real logit.
    out_ref[...] = jnp.dot(h2, w3_ref[...], preferred_element_type=f32) + b3


# ---------------------------------------------------------------------------
# Wrapper: one pallas_call for the whole forward pass
# ---------------------------------------------------------------------------
@jax.jit
def forward(params, query_input_ids, query_attention_mask, element_features):
    bp, hp = params["bert"], params["head"]
    batch, seq = query_input_ids.shape

    ids = query_input_ids.reshape(batch * seq, 1).astype(jnp.int32)

    # position + token-type(=0) embeddings, pre-added and tiled once (cheap,
    # done outside so the kernel sees a plain (B*S, H) additive term).
    pos_type = bp["pos_emb"] + bp["type_emb"][0][None, :]
    pos_type = jnp.tile(pos_type, (batch, 1))                      # (B*S, H)

    # Block-diagonal additive attention bias over the flattened B*S axis:
    # 0 where query and key belong to the same batch element AND the key is
    # unmasked; -1e9 everywhere else (cross-batch or masked key).
    blk = jnp.arange(batch * seq, dtype=jnp.int32) // seq
    same_block = (blk[:, None] == blk[None, :]).astype(jnp.float32)
    key_ok = query_attention_mask.astype(jnp.float32).reshape(1, batch * seq)
    attn_bias = (same_block * key_ok - 1.0) * 1e9                  # (BS, BS)

    # zero-pad element features 33 -> 128 so the classifier K-dim is lane-dense
    elem = jnp.zeros((batch, ELEM_PAD), jnp.float32)
    elem = elem.at[:, :ELEM_DIM].set(element_features.astype(jnp.float32))

    out = pl.pallas_call(
        _fused_forward_kernel,
        out_shape=jax.ShapeDtypeStruct((batch, OUT_PAD), jnp.float32),
        scratch_shapes=[pltpu.VMEM((batch * seq, HIDDEN), jnp.float32)],
    )(ids, pos_type, attn_bias, elem,
      bp["word_emb"], bp["wqkv"], bp["wo"], bp["wi"], bp["wo2"],
      bp["layer_vecs"],
      hp["w1_cls"], hp["w1_elem"], hp["w2"], hp["w3"], hp["vec_slab"])
    return out[:, 0]                                  # == logits.squeeze(-1)


# ---------------------------------------------------------------------------
# Deterministic parameter initialization (synthetic, no checkpoint)
# ---------------------------------------------------------------------------
def init_params(key):
    keys = iter(jax.random.split(key, 16))
    nk = lambda: next(keys)
    rnd = lambda shape: jax.random.normal(nk(), shape, jnp.float32) * 0.02

    # ---- BERT encoder weights ----------------------------------------------
    word_emb = rnd((VOCAB, HIDDEN))
    pos_emb = rnd((SEQ, HIDDEN))
    type_emb = rnd((2, HIDDEN))

    wqkv = rnd((NUM_LAYERS, HIDDEN, 3 * HIDDEN))
    bqkv = jnp.zeros((NUM_LAYERS, 3 * HIDDEN), jnp.float32)
    # Fold the 1/sqrt(head_dim) attention scale into the Q projection
    # (init-time constant fold; kernel no longer multiplies scores by _SCALE).
    wqkv = wqkv.at[:, :, 0:HIDDEN].multiply(_SCALE)
    bqkv = bqkv.at[:, 0:HIDDEN].multiply(_SCALE)

    wo = rnd((NUM_LAYERS, HIDDEN, HIDDEN))
    wi = rnd((NUM_LAYERS, HIDDEN, INTER))
    wo2 = rnd((NUM_LAYERS, INTER, HIDDEN))

    emb_ln_g = jnp.ones((HIDDEN,), jnp.float32)
    emb_ln_b = jnp.zeros((HIDDEN,), jnp.float32)
    bo = jnp.zeros((NUM_LAYERS, HIDDEN), jnp.float32)
    ln1_g = jnp.ones((NUM_LAYERS, HIDDEN), jnp.float32)
    ln1_b = jnp.zeros((NUM_LAYERS, HIDDEN), jnp.float32)
    bi = jnp.zeros((NUM_LAYERS, INTER), jnp.float32)
    bo2 = jnp.zeros((NUM_LAYERS, HIDDEN), jnp.float32)
    ln2_g = jnp.ones((NUM_LAYERS, HIDDEN), jnp.float32)
    ln2_b = jnp.zeros((NUM_LAYERS, HIDDEN), jnp.float32)

    # Per-layer bias / LN vectors packed as lane-aligned rows of ONE
    # (L, 8, 128) slab -> exactly one f32 VMEM tile per layer, one DMA.
    def lrow(v):
        L, K = v.shape
        return jnp.zeros((L, 1, VEC_PAD), jnp.float32).at[:, 0, :K].set(v)

    layer_vecs = jnp.concatenate(
        [lrow(bqkv), lrow(bo), lrow(ln1_g), lrow(ln1_b),
         lrow(bi), lrow(bo2), lrow(ln2_g), lrow(ln2_b)], axis=1)  # (L, 8, 128)

    bert = dict(word_emb=word_emb, pos_emb=pos_emb, type_emb=type_emb,
                wqkv=wqkv, wo=wo, wi=wi, wo2=wo2, layer_vecs=layer_vecs)

    # ---- classifier head -----------------------------------------------------
    # Linear(65->128) split into CLS / element blocks (element K zero-padded
    # 33->128); final Linear(64->1) padded to a 128-wide lane-dense output —
    # only column 0 is real.
    w1_cls = rnd((HIDDEN, FUSION))
    w1_elem = jnp.zeros((ELEM_PAD, FUSION), jnp.float32)
    w1_elem = w1_elem.at[:ELEM_DIM, :].set(rnd((ELEM_DIM, FUSION)))
    w2 = rnd((FUSION, FUSION // 2))
    w3 = jnp.zeros((FUSION // 2, OUT_PAD), jnp.float32)
    w3 = w3.at[:, 0:1].set(rnd((FUSION // 2, 1)))

    b1 = jnp.zeros((FUSION,), jnp.float32)
    bn_g = jnp.ones((FUSION,), jnp.float32)
    bn_b = jnp.zeros((FUSION,), jnp.float32)
    bn_mean = jnp.zeros((FUSION,), jnp.float32)
    bn_var = jnp.ones((FUSION,), jnp.float32)
    b2 = jnp.zeros((FUSION // 2,), jnp.float32)
    b3 = jnp.zeros((OUT_PAD,), jnp.float32)   # only column 0 is a real bias

    # Misc vector slab: rows 0-1 are the embedding LayerNorm params, rows 2-8
    # are the classifier-head bias / BatchNorm vectors (one DMA total).
    def hrow(v):
        return jnp.zeros((1, VEC_PAD), jnp.float32).at[0, :v.shape[0]].set(v)

    vec_slab = jnp.concatenate(
        [hrow(emb_ln_g), hrow(emb_ln_b), hrow(b1), hrow(bn_g), hrow(bn_b),
         hrow(bn_mean), hrow(bn_var), hrow(b2), hrow(b3)], axis=0)  # (9, 128)

    head = dict(w1_cls=w1_cls, w1_elem=w1_elem, w2=w2, w3=w3,
                vec_slab=vec_slab)
    return dict(bert=bert, head=head)


# ---------------------------------------------------------------------------
if __name__ == "__main__":
    key = jax.random.PRNGKey(0)
    k_param, k_ids, k_feat = jax.random.split(key, 3)

    params = init_params(k_param)
    query_input_ids = jax.random.randint(k_ids, (BATCH, SEQ), 0, VOCAB,
                                         dtype=jnp.int32)
    query_attention_mask = jnp.ones((BATCH, SEQ), jnp.int32).at[1, SEQ - 2:].set(0)
    element_features = jax.random.normal(k_feat, (BATCH, ELEM_DIM), jnp.float32)

    logits = forward(params, query_input_ids, query_attention_mask,
                     element_features)
    logits = jax.block_until_ready(logits)
    assert logits.shape == (BATCH,) and logits.dtype == jnp.float32
    print("KERNEL_OK")
</pallas_src>

<mosaic_0001>
module attributes {stable_mosaic.version = 11 : i64} {
  func.func @_fused_forward_kernel(%arg0: memref<16x1xi32, #tpu.memory_space<vmem>>, %arg1: memref<16x32xf32, #tpu.memory_space<vmem>>, %arg2: memref<16x16xf32, #tpu.memory_space<vmem>>, %arg3: memref<2x128xf32, #tpu.memory_space<vmem>>, %arg4: memref<50x32xf32, #tpu.memory_space<vmem>>, %arg5: memref<2x32x96xf32, #tpu.memory_space<vmem>>, %arg6: memref<2x32x32xf32, #tpu.memory_space<vmem>>, %arg7: memref<2x32x64xf32, #tpu.memory_space<vmem>>, %arg8: memref<2x64x32xf32, #tpu.memory_space<vmem>>, %arg9: memref<2x8x128xf32, #tpu.memory_space<vmem>>, %arg10: memref<32x128xf32, #tpu.memory_space<vmem>>, %arg11: memref<128x128xf32, #tpu.memory_space<vmem>>, %arg12: memref<128x64xf32, #tpu.memory_space<vmem>>, %arg13: memref<64x128xf32, #tpu.memory_space<vmem>>, %arg14: memref<9x128xf32, #tpu.memory_space<vmem>>, %arg15: memref<2x128xf32, #tpu.memory_space<vmem>>, %arg16: memref<16x32xf32, #tpu.memory_space<vmem>>) attributes {dimension_semantics = [], scalar_prefetch = 0 : i64, scratch_operands = 1 : i64, tpu.core_type = #tpu.core_type<tc>} {
    %c0 = arith.constant 0 : index
    %c0_0 = arith.constant 0 : index
    %0 = vector.load %arg14[%c0, %c0_0] : memref<9x128xf32, #tpu.memory_space<vmem>>, vector<9x128xf32>
    %1 = vector.extract_strided_slice %0 {offsets = [0, 0], sizes = [1, 32], strides = [1, 1]} : vector<9x128xf32> to vector<1x32xf32>
    %2 = vector.extract_strided_slice %0 {offsets = [1, 0], sizes = [1, 32], strides = [1, 1]} : vector<9x128xf32> to vector<1x32xf32>
    %c0_1 = arith.constant 0 : index
    %c0_2 = arith.constant 0 : index
    %3 = vector.load %arg0[%c0_1, %c0_2] : memref<16x1xi32, #tpu.memory_space<vmem>>, vector<16x1xi32>
    %4 = tpu.iota {dimensions = array<i32: 1>} : vector<16x50xi32>
    %5 = vector.broadcast %3 : vector<16x1xi32> to vector<16x50xi32>
    %6 = arith.cmpi eq, %4, %5 : vector<16x50xi32>
    %7 = arith.extui %6 : vector<16x50xi1> to vector<16x50xi32>
    %8 = arith.sitofp %7 : vector<16x50xi32> to vector<16x50xf32>
    %c0_3 = arith.constant 0 : index
    %c0_4 = arith.constant 0 : index
    %9 = vector.load %arg4[%c0_3, %c0_4] : memref<50x32xf32, #tpu.memory_space<vmem>>, vector<50x32xf32>
    %cst = arith.constant dense<0.000000e+00> : vector<16x32xf32>
    %10 = tpu.matmul %8, %9, %cst {dimension_numbers = #tpu.dot_dimension_numbers<[1], [0], [0], [1], [0, 0, 1, 1], [], []>} : vector<16x50xf32>, vector<50x32xf32>, vector<16x32xf32> -> vector<16x32xf32>
    %c0_5 = arith.constant 0 : index
    %c0_6 = arith.constant 0 : index
    %11 = vector.load %arg1[%c0_5, %c0_6] : memref<16x32xf32, #tpu.memory_space<vmem>>, vector<16x32xf32>
    %12 = arith.addf %10, %11 : vector<16x32xf32>
    %cst_7 = arith.constant dense<0.000000e+00> : vector<16xf32>
    %13 = vector.multi_reduction <add>, %12, %cst_7 [1] : vector<16x32xf32> to vector<16xf32>
    %14 = vector.shape_cast %13 : vector<16xf32> to vector<16x1xf32>
    %cst_8 = arith.constant 3.200000e+01 : f32
    %15 = vector.broadcast %cst_8 : f32 to vector<16x1xf32>
    %16 = arith.divf %14, %15 : vector<16x1xf32>
    %17 = arith.mulf %12, %12 : vector<16x32xf32>
    %cst_9 = arith.constant dense<0.000000e+00> : vector<16xf32>
    %18 = vector.multi_reduction <add>, %17, %cst_9 [1] : vector<16x32xf32> to vector<16xf32>
    %19 = vector.shape_cast %18 : vector<16xf32> to vector<16x1xf32>
    %cst_10 = arith.constant 3.200000e+01 : f32
    %20 = vector.broadcast %cst_10 : f32 to vector<16x1xf32>
    %21 = arith.divf %19, %20 : vector<16x1xf32>
    %22 = arith.mulf %16, %16 : vector<16x1xf32>
    %23 = arith.subf %21, %22 : vector<16x1xf32>
    %24 = vector.broadcast %16 : vector<16x1xf32> to vector<16x32xf32>
    %25 = arith.subf %12, %24 : vector<16x32xf32>
    %cst_11 = arith.constant 9.99999996E-13 : f32
    %26 = vector.broadcast %cst_11 : f32 to vector<16x1xf32>
    %27 = arith.addf %23, %26 : vector<16x1xf32>
    %28 = math.rsqrt %27 : vector<16x1xf32>
    %29 = vector.broadcast %28 : vector<16x1xf32> to vector<16x32xf32>
    %30 = arith.mulf %25, %29 : vector<16x32xf32>
    %31 = vector.broadcast %1 : vector<1x32xf32> to vector<16x32xf32>
    %32 = arith.mulf %30, %31 : vector<16x32xf32>
    %33 = vector.broadcast %2 : vector<1x32xf32> to vector<16x32xf32>
    %34 = arith.addf %32, %33 : vector<16x32xf32>
    %c0_12 = arith.constant 0 : index
    %c0_13 = arith.constant 0 : index
    %35 = vector.load %arg2[%c0_12, %c0_13] : memref<16x16xf32, #tpu.memory_space<vmem>>, vector<16x16xf32>
    %c0_14 = arith.constant 0 : index
    %c0_15 = arith.constant 0 : index
    %c0_16 = arith.constant 0 : index
    %36 = vector.load %arg9[%c0_14, %c0_15, %c0_16] : memref<2x8x128xf32, #tpu.memory_space<vmem>>, vector<1x8x128xf32>
    %37 = vector.shape_cast %36 : vector<1x8x128xf32> to vector<8x128xf32>
    %38 = vector.extract_strided_slice %37 {offsets = [0, 0], sizes = [1, 96], strides = [1, 1]} : vector<8x128xf32> to vector<1x96xf32>
    %39 = vector.extract_strided_slice %37 {offsets = [1, 0], sizes = [1, 32], strides = [1, 1]} : vector<8x128xf32> to vector<1x32xf32>
    %40 = vector.extract_strided_slice %37 {offsets = [2, 0], sizes = [1, 32], strides = [1, 1]} : vector<8x128xf32> to vector<1x32xf32>
    %41 = vector.extract_strided_slice %37 {offsets = [3, 0], sizes = [1, 32], strides = [1, 1]} : vector<8x128xf32> to vector<1x32xf32>
    %42 = vector.extract_strided_slice %37 {offsets = [4, 0], sizes = [1, 64], strides = [1, 1]} : vector<8x128xf32> to vector<1x64xf32>
    %43 = vector.extract_strided_slice %37 {offsets = [5, 0], sizes = [1, 32], strides = [1, 1]} : vector<8x128xf32> to vector<1x32xf32>
    %44 = vector.extract_strided_slice %37 {offsets = [6, 0], sizes = [1, 32], strides = [1, 1]} : vector<8x128xf32> to vector<1x32xf32>
    %45 = vector.extract_strided_slice %37 {offsets = [7, 0], sizes = [1, 32], strides = [1, 1]} : vector<8x128xf32> to vector<1x32xf32>
    %c0_17 = arith.constant 0 : index
    %c0_18 = arith.constant 0 : index
    %c0_19 = arith.constant 0 : index
    %46 = vector.load %arg5[%c0_17, %c0_18, %c0_19] : memref<2x32x96xf32, #tpu.memory_space<vmem>>, vector<1x32x96xf32>
    %47 = vector.shape_cast %46 : vector<1x32x96xf32> to vector<32x96xf32>
    %cst_20 = arith.constant dense<0.000000e+00> : vector<16x96xf32>
    %48 = tpu.matmul %34, %47, %cst_20 {dimension_numbers = #tpu.dot_dimension_numbers<[1], [0], [0], [1], [0, 0, 1, 1], [], []>} : vector<16x32xf32>, vector<32x96xf32>, vector<16x96xf32> -> vector<16x96xf32>
    %49 = vector.broadcast %38 : vector<1x96xf32> to vector<16x96xf32>
    %50 = arith.addf %48, %49 : vector<16x96xf32>
    %51 = vector.extract_strided_slice %50 {offsets = [0, 0], sizes = [16, 32], strides = [1, 1]} : vector<16x96xf32> to vector<16x32xf32>
    %52 = vector.extract_strided_slice %50 {offsets = [0, 32], sizes = [16, 32], strides = [1, 1]} : vector<16x96xf32> to vector<16x32xf32>
    %53 = vector.extract_strided_slice %50 {offsets = [0, 64], sizes = [16, 32], strides = [1, 1]} : vector<16x96xf32> to vector<16x32xf32>
    %54 = vector.extract_strided_slice %51 {offsets = [0, 0], sizes = [16, 16], strides = [1, 1]} : vector<16x32xf32> to vector<16x16xf32>
    %55 = vector.extract_strided_slice %52 {offsets = [0, 0], sizes = [16, 16], strides = [1, 1]} : vector<16x32xf32> to vector<16x16xf32>
    %56 = vector.extract_strided_slice %53 {offsets = [0, 0], sizes = [16, 16], strides = [1, 1]} : vector<16x32xf32> to vector<16x16xf32>
    %57 = tpu.transpose %55, [1, 0] : vector<16x16xf32> -> vector<16x16xf32>
    %cst_21 = arith.constant dense<0.000000e+00> : vector<16x16xf32>
    %58 = tpu.matmul %54, %57, %cst_21 {dimension_numbers = #tpu.dot_dimension_numbers<[1], [0], [0], [1], [0, 0, 1, 1], [], []>} : vector<16x16xf32>, vector<16x16xf32>, vector<16x16xf32> -> vector<16x16xf32>
    %59 = arith.addf %58, %35 : vector<16x16xf32>
    %cst_22 = arith.constant dense<0xFF800000> : vector<16xf32>
    %60 = vector.multi_reduction <maximumf>, %59, %cst_22 [1] : vector<16x16xf32> to vector<16xf32>
    %61 = vector.shape_cast %60 : vector<16xf32> to vector<16x1xf32>
    %62 = vector.broadcast %61 : vector<16x1xf32> to vector<16x16xf32>
    %63 = arith.subf %59, %62 : vector<16x16xf32>
    %64 = math.exp %63 : vector<16x16xf32>
    %cst_23 = arith.constant dense<0.000000e+00> : vector<16xf32>
    %65 = vector.multi_reduction <add>, %64, %cst_23 [1] : vector<16x16xf32> to vector<16xf32>
    %66 = vector.shape_cast %65 : vector<16xf32> to vector<16x1xf32>
    %67 = tpu.reciprocal %66 {approx = true} : vector<16x1xf32> -> vector<16x1xf32>
    %68 = vector.broadcast %67 : vector<16x1xf32> to vector<16x16xf32>
    %69 = arith.mulf %64, %68 : vector<16x16xf32>
    %cst_24 = arith.constant dense<0.000000e+00> : vector<16x16xf32>
    %70 = tpu.matmul %69, %56, %cst_24 {dimension_numbers = #tpu.dot_dimension_numbers<[1], [0], [0], [1], [0, 0, 1, 1], [], []>} : vector<16x16xf32>, vector<16x16xf32>, vector<16x16xf32> -> vector<16x16xf32>
    %c0_25 = arith.constant 0 : index
    %c0_26 = arith.constant 0 : index
    %71 = vector.load %arg16[%c0_25, %c0_26] : memref<16x32xf32, #tpu.memory_space<vmem>>, vector<16x16xf32>
    tpu.vector_store %arg16[%c0_25, %c0_26], %70 {strides = array<i32>} : memref<16x32xf32, #tpu.memory_space<vmem>>, vector<16x16xf32>,
    %72 = vector.extract_strided_slice %51 {offsets = [0, 16], sizes = [16, 16], strides = [1, 1]} : vector<16x32xf32> to vector<16x16xf32>
    %73 = vector.extract_strided_slice %52 {offsets = [0, 16], sizes = [16, 16], strides = [1, 1]} : vector<16x32xf32> to vector<16x16xf32>
    %74 = vector.extract_strided_slice %53 {offsets = [0, 16], sizes = [16, 16], strides = [1, 1]} : vector<16x32xf32> to vector<16x16xf32>
    %75 = tpu.transpose %73, [1, 0] : vector<16x16xf32> -> vector<16x16xf32>
    %cst_27 = arith.constant dense<0.000000e+00> : vector<16x16xf32>
    %76 = tpu.matmul %72, %75, %cst_27 {dimension_numbers = #tpu.dot_dimension_numbers<[1], [0], [0], [1], [0, 0, 1, 1], [], []>} : vector<16x16xf32>, vector<16x16xf32>, vector<16x16xf32> -> vector<16x16xf32>
    %77 = arith.addf %76, %35 : vector<16x16xf32>
    %cst_28 = arith.constant dense<0xFF800000> : vector<16xf32>
    %78 = vector.multi_reduction <maximumf>, %77, %cst_28 [1] : vector<16x16xf32> to vector<16xf32>
    %79 = vector.shape_cast %78 : vector<16xf32> to vector<16x1xf32>
    %80 = vector.broadcast %79 : vector<16x1xf32> to vector<16x16xf32>
    %81 = arith.subf %77, %80 : vector<16x16xf32>
    %82 = math.exp %81 : vector<16x16xf32>
    %cst_29 = arith.constant dense<0.000000e+00> : vector<16xf32>
    %83 = vector.multi_reduction <add>, %82, %cst_29 [1] : vector<16x16xf32> to vector<16xf32>
    %84 = vector.shape_cast %83 : vector<16xf32> to vector<16x1xf32>
    %85 = tpu.reciprocal %84 {approx = true} : vector<16x1xf32> -> vector<16x1xf32>
    %86 = vector.broadcast %85 : vector<16x1xf32> to vector<16x16xf32>
    %87 = arith.mulf %82, %86 : vector<16x16xf32>
    %cst_30 = arith.constant dense<0.000000e+00> : vector<16x16xf32>
    %88 = tpu.matmul %87, %74, %cst_30 {dimension_numbers = #tpu.dot_dimension_numbers<[1], [0], [0], [1], [0, 0, 1, 1], [], []>} : vector<16x16xf32>, vector<16x16xf32>, vector<16x16xf32> -> vector<16x16xf32>
    %c0_31 = arith.constant 0 : index
    %c16 = arith.constant 16 : index
    %89 = vector.load %arg16[%c0_31, %c16] : memref<16x32xf32, #tpu.memory_space<vmem>>, vector<16x16xf32>
    tpu.vector_store %arg16[%c0_31, %c16], %88 {strides = array<i32>} : memref<16x32xf32, #tpu.memory_space<vmem>>, vector<16x16xf32>,
    %c0_32 = arith.constant 0 : index
    %c0_33 = arith.constant 0 : index
    %90 = vector.load %arg16[%c0_32, %c0_33] : memref<16x32xf32, #tpu.memory_space<vmem>>, vector<16x32xf32>
    %c0_34 = arith.constant 0 : index
    %c0_35 = arith.constant 0 : index
    %c0_36 = arith.constant 0 : index
    %91 = vector.load %arg6[%c0_34, %c0_35, %c0_36] : memref<2x32x32xf32, #tpu.memory_space<vmem>>, vector<1x32x32xf32>
    %92 = vector.shape_cast %91 : vector<1x32x32xf32> to vector<32x32xf32>
    %cst_37 = arith.constant dense<0.000000e+00> : vector<16x32xf32>
    %93 = tpu.matmul %90, %92, %cst_37 {dimension_numbers = #tpu.dot_dimension_numbers<[1], [0], [0], [1], [0, 0, 1, 1], [], []>} : vector<16x32xf32>, vector<32x32xf32>, vector<16x32xf32> -> vector<16x32xf32>
    %94 = vector.broadcast %39 : vector<1x32xf32> to vector<16x32xf32>
    %95 = arith.addf %93, %94 : vector<16x32xf32>
    %96 = arith.addf %34, %95 : vector<16x32xf32>
    %cst_38 = arith.constant dense<0.000000e+00> : vector<16xf32>
    %97 = vector.multi_reduction <add>, %96, %cst_38 [1] : vector<16x32xf32> to vector<16xf32>
    %98 = vector.shape_cast %97 : vector<16xf32> to vector<16x1xf32>
    %cst_39 = arith.constant 3.200000e+01 : f32
    %99 = vector.broadcast %cst_39 : f32 to vector<16x1xf32>
    %100 = arith.divf %98, %99 : vector<16x1xf32>
    %101 = arith.mulf %96, %96 : vector<16x32xf32>
    %cst_40 = arith.constant dense<0.000000e+00> : vector<16xf32>
    %102 = vector.multi_reduction <add>, %101, %cst_40 [1] : vector<16x32xf32> to vector<16xf32>
    %103 = vector.shape_cast %102 : vector<16xf32> to vector<16x1xf32>
    %cst_41 = arith.constant 3.200000e+01 : f32
    %104 = vector.broadcast %cst_41 : f32 to vector<16x1xf32>
    %105 = arith.divf %103, %104 : vector<16x1xf32>
    %106 = arith.mulf %100, %100 : vector<16x1xf32>
    %107 = arith.subf %105, %106 : vector<16x1xf32>
    %108 = vector.broadcast %100 : vector<16x1xf32> to vector<16x32xf32>
    %109 = arith.subf %96, %108 : vector<16x32xf32>
    %cst_42 = arith.constant 9.99999996E-13 : f32
    %110 = vector.broadcast %cst_42 : f32 to vector<16x1xf32>
    %111 = arith.addf %107, %110 : vector<16x1xf32>
    %112 = math.rsqrt %111 : vector<16x1xf32>
    %113 = vector.broadcast %112 : vector<16x1xf32> to vector<16x32xf32>
    %114 = arith.mulf %109, %113 : vector<16x32xf32>
    %115 = vector.broadcast %40 : vector<1x32xf32> to vector<16x32xf32>
    %116 = arith.mulf %114, %115 : vector<16x32xf32>
    %117 = vector.broadcast %41 : vector<1x32xf32> to vector<16x32xf32>
    %118 = arith.addf %116, %117 : vector<16x32xf32>
    %c0_43 = arith.constant 0 : index
    %c0_44 = arith.constant 0 : index
    %c0_45 = arith.constant 0 : index
    %119 = vector.load %arg7[%c0_43, %c0_44, %c0_45] : memref<2x32x64xf32, #tpu.memory_space<vmem>>, vector<1x32x64xf32>
    %120 = vector.shape_cast %119 : vector<1x32x64xf32> to vector<32x64xf32>
    %cst_46 = arith.constant dense<0.000000e+00> : vector<16x64xf32>
    %121 = tpu.matmul %118, %120, %cst_46 {dimension_numbers = #tpu.dot_dimension_numbers<[1], [0], [0], [1], [0, 0, 1, 1], [], []>} : vector<16x32xf32>, vector<32x64xf32>, vector<16x64xf32> -> vector<16x64xf32>
    %122 = vector.broadcast %42 : vector<1x64xf32> to vector<16x64xf32>
    %123 = arith.addf %121, %122 : vector<16x64xf32>
    %cst_47 = arith.constant 5.000000e-01 : f32
    %124 = vector.broadcast %cst_47 : f32 to vector<16x64xf32>
    %125 = arith.mulf %124, %123 : vector<16x64xf32>
    %cst_48 = arith.constant 4.471500e-02 : f32
    %126 = vector.broadcast %cst_48 : f32 to vector<16x64xf32>
    %127 = arith.mulf %126, %123 : vector<16x64xf32>
    %128 = arith.mulf %127, %123 : vector<16x64xf32>
    %129 = arith.mulf %128, %123 : vector<16x64xf32>
    %130 = arith.addf %123, %129 : vector<16x64xf32>
    %cst_49 = arith.constant 0.797884583 : f32
    %131 = vector.broadcast %cst_49 : f32 to vector<16x64xf32>
    %132 = arith.mulf %131, %130 : vector<16x64xf32>
    %133 = math.tanh %132 : vector<16x64xf32>
    %cst_50 = arith.constant 1.000000e+00 : f32
    %134 = vector.broadcast %cst_50 : f32 to vector<16x64xf32>
    %135 = arith.addf %134, %133 : vector<16x64xf32>
    %136 = arith.mulf %125, %135 : vector<16x64xf32>
    %c0_51 = arith.constant 0 : index
    %c0_52 = arith.constant 0 : index
    %c0_53 = arith.constant 0 : index
    %137 = vector.load %arg8[%c0_51, %c0_52, %c0_53] : memref<2x64x32xf32, #tpu.memory_space<vmem>>, vector<1x64x32xf32>
    %138 = vector.shape_cast %137 : vector<1x64x32xf32> to vector<64x32xf32>
    %cst_54 = arith.constant dense<0.000000e+00> : vector<16x32xf32>
    %139 = tpu.matmul %136, %138, %cst_54 {dimension_numbers = #tpu.dot_dimension_numbers<[1], [0], [0], [1], [0, 0, 1, 1], [], []>} : vector<16x64xf32>, vector<64x32xf32>, vector<16x32xf32> -> vector<16x32xf32>
    %140 = vector.broadcast %43 : vector<1x32xf32> to vector<16x32xf32>
    %141 = arith.addf %139, %140 : vector<16x32xf32>
    %142 = arith.addf %118, %141 : vector<16x32xf32>
    %cst_55 = arith.constant dense<0.000000e+00> : vector<16xf32>
    %143 = vector.multi_reduction <add>, %142, %cst_55 [1] : vector<16x32xf32> to vector<16xf32>
    %144 = vector.shape_cast %143 : vector<16xf32> to vector<16x1xf32>
    %cst_56 = arith.constant 3.200000e+01 : f32
    %145 = vector.broadcast %cst_56 : f32 to vector<16x1xf32>
    %146 = arith.divf %144, %145 : vector<16x1xf32>
    %147 = arith.mulf %142, %142 : vector<16x32xf32>
    %cst_57 = arith.constant dense<0.000000e+00> : vector<16xf32>
    %148 = vector.multi_reduction <add>, %147, %cst_57 [1] : vector<16x32xf32> to vector<16xf32>
    %149 = vector.shape_cast %148 : vector<16xf32> to vector<16x1xf32>
    %cst_58 = arith.constant 3.200000e+01 : f32
    %150 = vector.broadcast %cst_58 : f32 to vector<16x1xf32>
    %151 = arith.divf %149, %150 : vector<16x1xf32>
    %152 = arith.mulf %146, %146 : vector<16x1xf32>
    %153 = arith.subf %151, %152 : vector<16x1xf32>
    %154 = vector.broadcast %146 : vector<16x1xf32> to vector<16x32xf32>
    %155 = arith.subf %142, %154 : vector<16x32xf32>
    %cst_59 = arith.constant 9.99999996E-13 : f32
    %156 = vector.broadcast %cst_59 : f32 to vector<16x1xf32>
    %157 = arith.addf %153, %156 : vector<16x1xf32>
    %158 = math.rsqrt %157 : vector<16x1xf32>
    %159 = vector.broadcast %158 : vector<16x1xf32> to vector<16x32xf32>
    %160 = arith.mulf %155, %159 : vector<16x32xf32>
    %161 = vector.broadcast %44 : vector<1x32xf32> to vector<16x32xf32>
    %162 = arith.mulf %160, %161 : vector<16x32xf32>
    %163 = vector.broadcast %45 : vector<1x32xf32> to vector<16x32xf32>
    %164 = arith.addf %162, %163 : vector<16x32xf32>
    %c1 = arith.constant 1 : index
    %c0_60 = arith.constant 0 : index
    %c0_61 = arith.constant 0 : index
    %165 = vector.load %arg9[%c1, %c0_60, %c0_61] : memref<2x8x128xf32, #tpu.memory_space<vmem>>, vector<1x8x128xf32>
    %166 = vector.shape_cast %165 : vector<1x8x128xf32> to vector<8x128xf32>
    %167 = vector.extract_strided_slice %166 {offsets = [0, 0], sizes = [1, 96], strides = [1, 1]} : vector<8x128xf32> to vector<1x96xf32>
    %168 = vector.extract_strided_slice %166 {offsets = [1, 0], sizes = [1, 32], strides = [1, 1]} : vector<8x128xf32> to vector<1x32xf32>
    %169 = vector.extract_strided_slice %166 {offsets = [2, 0], sizes = [1, 32], strides = [1, 1]} : vector<8x128xf32> to vector<1x32xf32>
    %170 = vector.extract_strided_slice %166 {offsets = [3, 0], sizes = [1, 32], strides = [1, 1]} : vector<8x128xf32> to vector<1x32xf32>
    %171 = vector.extract_strided_slice %166 {offsets = [4, 0], sizes = [1, 64], strides = [1, 1]} : vector<8x128xf32> to vector<1x64xf32>
    %172 = vector.extract_strided_slice %166 {offsets = [5, 0], sizes = [1, 32], strides = [1, 1]} : vector<8x128xf32> to vector<1x32xf32>
    %173 = vector.extract_strided_slice %166 {offsets = [6, 0], sizes = [1, 32], strides = [1, 1]} : vector<8x128xf32> to vector<1x32xf32>
    %174 = vector.extract_strided_slice %166 {offsets = [7, 0], sizes = [1, 32], strides = [1, 1]} : vector<8x128xf32> to vector<1x32xf32>
    %c1_62 = arith.constant 1 : index
    %c0_63 = arith.constant 0 : index
    %c0_64 = arith.constant 0 : index
    %175 = vector.load %arg5[%c1_62, %c0_63, %c0_64] : memref<2x32x96xf32, #tpu.memory_space<vmem>>, vector<1x32x96xf32>
    %176 = vector.shape_cast %175 : vector<1x32x96xf32> to vector<32x96xf32>
    %cst_65 = arith.constant dense<0.000000e+00> : vector<16x96xf32>
    %177 = tpu.matmul %164, %176, %cst_65 {dimension_numbers = #tpu.dot_dimension_numbers<[1], [0], [0], [1], [0, 0, 1, 1], [], []>} : vector<16x32xf32>, vector<32x96xf32>, vector<16x96xf32> -> vector<16x96xf32>
    %178 = vector.broadcast %167 : vector<1x96xf32> to vector<16x96xf32>
    %179 = arith.addf %177, %178 : vector<16x96xf32>
    %180 = vector.extract_strided_slice %179 {offsets = [0, 0], sizes = [16, 32], strides = [1, 1]} : vector<16x96xf32> to vector<16x32xf32>
    %181 = vector.extract_strided_slice %179 {offsets = [0, 32], sizes = [16, 32], strides = [1, 1]} : vector<16x96xf32> to vector<16x32xf32>
    %182 = vector.extract_strided_slice %179 {offsets = [0, 64], sizes = [16, 32], strides = [1, 1]} : vector<16x96xf32> to vector<16x32xf32>
    %183 = vector.extract_strided_slice %180 {offsets = [0, 0], sizes = [16, 16], strides = [1, 1]} : vector<16x32xf32> to vector<16x16xf32>
    %184 = vector.extract_strided_slice %181 {offsets = [0, 0], sizes = [16, 16], strides = [1, 1]} : vector<16x32xf32> to vector<16x16xf32>
    %185 = vector.extract_strided_slice %182 {offsets = [0, 0], sizes = [16, 16], strides = [1, 1]} : vector<16x32xf32> to vector<16x16xf32>
    %186 = tpu.transpose %184, [1, 0] : vector<16x16xf32> -> vector<16x16xf32>
    %cst_66 = arith.constant dense<0.000000e+00> : vector<16x16xf32>
    %187 = tpu.matmul %183, %186, %cst_66 {dimension_numbers = #tpu.dot_dimension_numbers<[1], [0], [0], [1], [0, 0, 1, 1], [], []>} : vector<16x16xf32>, vector<16x16xf32>, vector<16x16xf32> -> vector<16x16xf32>
    %188 = arith.addf %187, %35 : vector<16x16xf32>
    %cst_67 = arith.constant dense<0xFF800000> : vector<16xf32>
    %189 = vector.multi_reduction <maximumf>, %188, %cst_67 [1] : vector<16x16xf32> to vector<16xf32>
    %190 = vector.shape_cast %189 : vector<16xf32> to vector<16x1xf32>
    %191 = vector.broadcast %190 : vector<16x1xf32> to vector<16x16xf32>
    %192 = arith.subf %188, %191 : vector<16x16xf32>
    %193 = math.exp %192 : vector<16x16xf32>
    %cst_68 = arith.constant dense<0.000000e+00> : vector<16xf32>
    %194 = vector.multi_reduction <add>, %193, %cst_68 [1] : vector<16x16xf32> to vector<16xf32>
    %195 = vector.shape_cast %194 : vector<16xf32> to vector<16x1xf32>
    %196 = tpu.reciprocal %195 {approx = true} : vector<16x1xf32> -> vector<16x1xf32>
    %197 = vector.broadcast %196 : vector<16x1xf32> to vector<16x16xf32>
    %198 = arith.mulf %193, %197 : vector<16x16xf32>
    %cst_69 = arith.constant dense<0.000000e+00> : vector<16x16xf32>
    %199 = tpu.matmul %198, %185, %cst_69 {dimension_numbers = #tpu.dot_dimension_numbers<[1], [0], [0], [1], [0, 0, 1, 1], [], []>} : vector<16x16xf32>, vector<16x16xf32>, vector<16x16xf32> -> vector<16x16xf32>
    %c0_70 = arith.constant 0 : index
    %c0_71 = arith.constant 0 : index
    %200 = vector.load %arg16[%c0_70, %c0_71] : memref<16x32xf32, #tpu.memory_space<vmem>>, vector<16x16xf32>
    tpu.vector_store %arg16[%c0_70, %c0_71], %199 {strides = array<i32>} : memref<16x32xf32, #tpu.memory_space<vmem>>, vector<16x16xf32>,
    %201 = vector.extract_strided_slice %180 {offsets = [0, 16], sizes = [16, 16], strides = [1, 1]} : vector<16x32xf32> to vector<16x16xf32>
    %202 = vector.extract_strided_slice %181 {offsets = [0, 16], sizes = [16, 16], strides = [1, 1]} : vector<16x32xf32> to vector<16x16xf32>
    %203 = vector.extract_strided_slice %182 {offsets = [0, 16], sizes = [16, 16], strides = [1, 1]} : vector<16x32xf32> to vector<16x16xf32>
    %204 = tpu.transpose %202, [1, 0] : vector<16x16xf32> -> vector<16x16xf32>
    %cst_72 = arith.constant dense<0.000000e+00> : vector<16x16xf32>
    %205 = tpu.matmul %201, %204, %cst_72 {dimension_numbers = #tpu.dot_dimension_numbers<[1], [0], [0], [1], [0, 0, 1, 1], [], []>} : vector<16x16xf32>, vector<16x16xf32>, vector<16x16xf32> -> vector<16x16xf32>
    %206 = arith.addf %205, %35 : vector<16x16xf32>
    %cst_73 = arith.constant dense<0xFF800000> : vector<16xf32>
    %207 = vector.multi_reduction <maximumf>, %206, %cst_73 [1] : vector<16x16xf32> to vector<16xf32>
    %208 = vector.shape_cast %207 : vector<16xf32> to vector<16x1xf32>
    %209 = vector.broadcast %208 : vector<16x1xf32> to vector<16x16xf32>
    %210 = arith.subf %206, %209 : vector<16x16xf32>
    %211 = math.exp %210 : vector<16x16xf32>
    %cst_74 = arith.constant dense<0.000000e+00> : vector<16xf32>
    %212 = vector.multi_reduction <add>, %211, %cst_74 [1] : vector<16x16xf32> to vector<16xf32>
    %213 = vector.shape_cast %212 : vector<16xf32> to vector<16x1xf32>
    %214 = tpu.reciprocal %213 {approx = true} : vector<16x1xf32> -> vector<16x1xf32>
    %215 = vector.broadcast %214 : vector<16x1xf32> to vector<16x16xf32>
    %216 = arith.mulf %211, %215 : vector<16x16xf32>
    %cst_75 = arith.constant dense<0.000000e+00> : vector<16x16xf32>
    %217 = tpu.matmul %216, %203, %cst_75 {dimension_numbers = #tpu.dot_dimension_numbers<[1], [0], [0], [1], [0, 0, 1, 1], [], []>} : vector<16x16xf32>, vector<16x16xf32>, vector<16x16xf32> -> vector<16x16xf32>
    %c0_76 = arith.constant 0 : index
    %c16_77 = arith.constant 16 : index
    %218 = vector.load %arg16[%c0_76, %c16_77] : memref<16x32xf32, #tpu.memory_space<vmem>>, vector<16x16xf32>
    tpu.vector_store %arg16[%c0_76, %c16_77], %217 {strides = array<i32>} : memref<16x32xf32, #tpu.memory_space<vmem>>, vector<16x16xf32>,
    %c0_78 = arith.constant 0 : index
    %c0_79 = arith.constant 0 : index
    %219 = vector.load %arg16[%c0_78, %c0_79] : memref<16x32xf32, #tpu.memory_space<vmem>>, vector<16x32xf32>
    %c1_80 = arith.constant 1 : index
    %c0_81 = arith.constant 0 : index
    %c0_82 = arith.constant 0 : index
    %220 = vector.load %arg6[%c1_80, %c0_81, %c0_82] : memref<2x32x32xf32, #tpu.memory_space<vmem>>, vector<1x32x32xf32>
    %221 = vector.shape_cast %220 : vector<1x32x32xf32> to vector<32x32xf32>
    %cst_83 = arith.constant dense<0.000000e+00> : vector<16x32xf32>
    %222 = tpu.matmul %219, %221, %cst_83 {dimension_numbers = #tpu.dot_dimension_numbers<[1], [0], [0], [1], [0, 0, 1, 1], [], []>} : vector<16x32xf32>, vector<32x32xf32>, vector<16x32xf32> -> vector<16x32xf32>
    %223 = vector.broadcast %168 : vector<1x32xf32> to vector<16x32xf32>
    %224 = arith.addf %222, %223 : vector<16x32xf32>
    %225 = arith.addf %164, %224 : vector<16x32xf32>
    %cst_84 = arith.constant dense<0.000000e+00> : vector<16xf32>
    %226 = vector.multi_reduction <add>, %225, %cst_84 [1] : vector<16x32xf32> to vector<16xf32>
    %227 = vector.shape_cast %226 : vector<16xf32> to vector<16x1xf32>
    %cst_85 = arith.constant 3.200000e+01 : f32
    %228 = vector.broadcast %cst_85 : f32 to vector<16x1xf32>
    %229 = arith.divf %227, %228 : vector<16x1xf32>
    %230 = arith.mulf %225, %225 : vector<16x32xf32>
    %cst_86 = arith.constant dense<0.000000e+00> : vector<16xf32>
    %231 = vector.multi_reduction <add>, %230, %cst_86 [1] : vector<16x32xf32> to vector<16xf32>
    %232 = vector.shape_cast %231 : vector<16xf32> to vector<16x1xf32>
    %cst_87 = arith.constant 3.200000e+01 : f32
    %233 = vector.broadcast %cst_87 : f32 to vector<16x1xf32>
    %234 = arith.divf %232, %233 : vector<16x1xf32>
    %235 = arith.mulf %229, %229 : vector<16x1xf32>
    %236 = arith.subf %234, %235 : vector<16x1xf32>
    %237 = vector.broadcast %229 : vector<16x1xf32> to vector<16x32xf32>
    %238 = arith.subf %225, %237 : vector<16x32xf32>
    %cst_88 = arith.constant 9.99999996E-13 : f32
    %239 = vector.broadcast %cst_88 : f32 to vector<16x1xf32>
    %240 = arith.addf %236, %239 : vector<16x1xf32>
    %241 = math.rsqrt %240 : vector<16x1xf32>
    %242 = vector.broadcast %241 : vector<16x1xf32> to vector<16x32xf32>
    %243 = arith.mulf %238, %242 : vector<16x32xf32>
    %244 = vector.broadcast %169 : vector<1x32xf32> to vector<16x32xf32>
    %245 = arith.mulf %243, %244 : vector<16x32xf32>
    %246 = vector.broadcast %170 : vector<1x32xf32> to vector<16x32xf32>
    %247 = arith.addf %245, %246 : vector<16x32xf32>
    %c1_89 = arith.constant 1 : index
    %c0_90 = arith.constant 0 : index
    %c0_91 = arith.constant 0 : index
    %248 = vector.load %arg7[%c1_89, %c0_90, %c0_91] : memref<2x32x64xf32, #tpu.memory_space<vmem>>, vector<1x32x64xf32>
    %249 = vector.shape_cast %248 : vector<1x32x64xf32> to vector<32x64xf32>
    %cst_92 = arith.constant dense<0.000000e+00> : vector<16x64xf32>
    %250 = tpu.matmul %247, %249, %cst_92 {dimension_numbers = #tpu.dot_dimension_numbers<[1], [0], [0], [1], [0, 0, 1, 1], [], []>} : vector<16x32xf32>, vector<32x64xf32>, vector<16x64xf32> -> vector<16x64xf32>
    %251 = vector.broadcast %171 : vector<1x64xf32> to vector<16x64xf32>
    %252 = arith.addf %250, %251 : vector<16x64xf32>
    %cst_93 = arith.constant 5.000000e-01 : f32
    %253 = vector.broadcast %cst_93 : f32 to vector<16x64xf32>
    %254 = arith.mulf %253, %252 : vector<16x64xf32>
    %cst_94 = arith.constant 4.471500e-02 : f32
    %255 = vector.broadcast %cst_94 : f32 to vector<16x64xf32>
    %256 = arith.mulf %255, %252 : vector<16x64xf32>
    %257 = arith.mulf %256, %252 : vector<16x64xf32>
    %258 = arith.mulf %257, %252 : vector<16x64xf32>
    %259 = arith.addf %252, %258 : vector<16x64xf32>
    %cst_95 = arith.constant 0.797884583 : f32
    %260 = vector.broadcast %cst_95 : f32 to vector<16x64xf32>
    %261 = arith.mulf %260, %259 : vector<16x64xf32>
    %262 = math.tanh %261 : vector<16x64xf32>
    %cst_96 = arith.constant 1.000000e+00 : f32
    %263 = vector.broadcast %cst_96 : f32 to vector<16x64xf32>
    %264 = arith.addf %263, %262 : vector<16x64xf32>
    %265 = arith.mulf %254, %264 : vector<16x64xf32>
    %c1_97 = arith.constant 1 : index
    %c0_98 = arith.constant 0 : index
    %c0_99 = arith.constant 0 : index
    %266 = vector.load %arg8[%c1_97, %c0_98, %c0_99] : memref<2x64x32xf32, #tpu.memory_space<vmem>>, vector<1x64x32xf32>
    %267 = vector.shape_cast %266 : vector<1x64x32xf32> to vector<64x32xf32>
    %cst_100 = arith.constant dense<0.000000e+00> : vector<16x32xf32>
    %268 = tpu.matmul %265, %267, %cst_100 {dimension_numbers = #tpu.dot_dimension_numbers<[1], [0], [0], [1], [0, 0, 1, 1], [], []>} : vector<16x64xf32>, vector<64x32xf32>, vector<16x32xf32> -> vector<16x32xf32>
    %269 = vector.broadcast %172 : vector<1x32xf32> to vector<16x32xf32>
    %270 = arith.addf %268, %269 : vector<16x32xf32>
    %271 = arith.addf %247, %270 : vector<16x32xf32>
    %cst_101 = arith.constant dense<0.000000e+00> : vector<16xf32>
    %272 = vector.multi_reduction <add>, %271, %cst_101 [1] : vector<16x32xf32> to vector<16xf32>
    %273 = vector.shape_cast %272 : vector<16xf32> to vector<16x1xf32>
    %cst_102 = arith.constant 3.200000e+01 : f32
    %274 = vector.broadcast %cst_102 : f32 to vector<16x1xf32>
    %275 = arith.divf %273, %274 : vector<16x1xf32>
    %276 = arith.mulf %271, %271 : vector<16x32xf32>
    %cst_103 = arith.constant dense<0.000000e+00> : vector<16xf32>
    %277 = vector.multi_reduction <add>, %276, %cst_103 [1] : vector<16x32xf32> to vector<16xf32>
    %278 = vector.shape_cast %277 : vector<16xf32> to vector<16x1xf32>
    %cst_104 = arith.constant 3.200000e+01 : f32
    %279 = vector.broadcast %cst_104 : f32 to vector<16x1xf32>
    %280 = arith.divf %278, %279 : vector<16x1xf32>
    %281 = arith.mulf %275, %275 : vector<16x1xf32>
    %282 = arith.subf %280, %281 : vector<16x1xf32>
    %283 = vector.broadcast %275 : vector<16x1xf32> to vector<16x32xf32>
    %284 = arith.subf %271, %283 : vector<16x32xf32>
    %cst_105 = arith.constant 9.99999996E-13 : f32
    %285 = vector.broadcast %cst_105 : f32 to vector<16x1xf32>
    %286 = arith.addf %282, %285 : vector<16x1xf32>
    %287 = math.rsqrt %286 : vector<16x1xf32>
    %288 = vector.broadcast %287 : vector<16x1xf32> to vector<16x32xf32>
    %289 = arith.mulf %284, %288 : vector<16x32xf32>
    %290 = vector.broadcast %173 : vector<1x32xf32> to vector<16x32xf32>
    %291 = arith.mulf %289, %290 : vector<16x32xf32>
    %292 = vector.broadcast %174 : vector<1x32xf32> to vector<16x32xf32>
    %293 = arith.addf %291, %292 : vector<16x32xf32>
    %294 = tpu.iota {dimensions = array<i32: 0>} : vector<2x16xi32>
    %295 = tpu.iota {dimensions = array<i32: 1>} : vector<2x16xi32>
    %c8_i32 = arith.constant 8 : i32
    %296 = vector.broadcast %c8_i32 : i32 to vector<2x16xi32>
    %297 = arith.muli %294, %296 : vector<2x16xi32>
    %298 = arith.cmpi eq, %295, %297 : vector<2x16xi32>
    %299 = arith.extui %298 : vector<2x16xi1> to vector<2x16xi32>
    %300 = arith.sitofp %299 : vector<2x16xi32> to vector<2x16xf32>
    %cst_106 = arith.constant dense<0.000000e+00> : vector<2x32xf32>
    %301 = tpu.matmul %300, %293, %cst_106 {dimension_numbers = #tpu.dot_dimension_numbers<[1], [0], [0], [1], [0, 0, 1, 1], [], []>} : vector<2x16xf32>, vector<16x32xf32>, vector<2x32xf32> -> vector<2x32xf32>
    %302 = vector.extract_strided_slice %0 {offsets = [2, 0], sizes = [1, 128], strides = [1, 1]} : vector<9x128xf32> to vector<1x128xf32>
    %303 = vector.extract_strided_slice %0 {offsets = [3, 0], sizes = [1, 128], strides = [1, 1]} : vector<9x128xf32> to vector<1x128xf32>
    %304 = vector.extract_strided_slice %0 {offsets = [4, 0], sizes = [1, 128], strides = [1, 1]} : vector<9x128xf32> to vector<1x128xf32>
    %305 = vector.extract_strided_slice %0 {offsets = [5, 0], sizes = [1, 128], strides = [1, 1]} : vector<9x128xf32> to vector<1x128xf32>
    %306 = vector.extract_strided_slice %0 {offsets = [6, 0], sizes = [1, 128], strides = [1, 1]} : vector<9x128xf32> to vector<1x128xf32>
    %307 = vector.extract_strided_slice %0 {offsets = [7, 0], sizes = [1, 64], strides = [1, 1]} : vector<9x128xf32> to vector<1x64xf32>
    %308 = vector.extract_strided_slice %0 {offsets = [8, 0], sizes = [1, 128], strides = [1, 1]} : vector<9x128xf32> to vector<1x128xf32>
    %c0_107 = arith.constant 0 : index
    %c0_108 = arith.constant 0 : index
    %309 = vector.load %arg10[%c0_107, %c0_108] : memref<32x128xf32, #tpu.memory_space<vmem>>, vector<32x128xf32>
    %cst_109 = arith.constant dense<0.000000e+00> : vector<2x128xf32>
    %310 = tpu.matmul %301, %309, %cst_109 {dimension_numbers = #tpu.dot_dimension_numbers<[1], [0], [0], [1], [0, 0, 1, 1], [], []>} : vector<2x32xf32>, vector<32x128xf32>, vector<2x128xf32> -> vector<2x128xf32>
    %c0_110 = arith.constant 0 : index
    %c0_111 = arith.constant 0 : index
    %311 = vector.load %arg3[%c0_110, %c0_111] : memref<2x128xf32, #tpu.memory_space<vmem>>, vector<2x128xf32>
    %c0_112 = arith.constant 0 : index
    %c0_113 = arith.constant 0 : index
    %312 = vector.load %arg11[%c0_112, %c0_113] : memref<128x128xf32, #tpu.memory_space<vmem>>, vector<128x128xf32>
    %cst_114 = arith.constant dense<0.000000e+00> : vector<2x128xf32>
    %313 = tpu.matmul %311, %312, %cst_114 {dimension_numbers = #tpu.dot_dimension_numbers<[1], [0], [0], [1], [0, 0, 1, 1], [], []>} : vector<2x128xf32>, vector<128x128xf32>, vector<2x128xf32> -> vector<2x128xf32>
    %314 = arith.addf %310, %313 : vector<2x128xf32>
    %315 = vector.broadcast %302 : vector<1x128xf32> to vector<2x128xf32>
    %316 = arith.addf %314, %315 : vector<2x128xf32>
    %317 = vector.broadcast %305 : vector<1x128xf32> to vector<2x128xf32>
    %318 = arith.subf %316, %317 : vector<2x128xf32>
    %cst_115 = arith.constant 9.99999974E-6 : f32
    %319 = vector.broadcast %cst_115 : f32 to vector<1x128xf32>
    %320 = arith.addf %306, %319 : vector<1x128xf32>
    %321 = math.rsqrt %320 : vector<1x128xf32>
    %322 = vector.broadcast %321 : vector<1x128xf32> to vector<2x128xf32>
    %323 = arith.mulf %318, %322 : vector<2x128xf32>
    %324 = vector.broadcast %303 : vector<1x128xf32> to vector<2x128xf32>
    %325 = arith.mulf %323, %324 : vector<2x128xf32>
    %326 = vector.broadcast %304 : vector<1x128xf32> to vector<2x128xf32>
    %327 = arith.addf %325, %326 : vector<2x128xf32>
    %cst_116 = arith.constant 0.000000e+00 : f32
    %328 = vector.broadcast %cst_116 : f32 to vector<2x128xf32>
    %329 = arith.maximumf %327, %328 : vector<2x128xf32>
    %c0_117 = arith.constant 0 : index
    %c0_118 = arith.constant 0 : index
    %330 = vector.load %arg12[%c0_117, %c0_118] : memref<128x64xf32, #tpu.memory_space<vmem>>, vector<128x64xf32>
    %cst_119 = arith.constant dense<0.000000e+00> : vector<2x64xf32>
    %331 = tpu.matmul %329, %330, %cst_119 {dimension_numbers = #tpu.dot_dimension_numbers<[1], [0], [0], [1], [0, 0, 1, 1], [], []>} : vector<2x128xf32>, vector<128x64xf32>, vector<2x64xf32> -> vector<2x64xf32>
    %332 = vector.broadcast %307 : vector<1x64xf32> to vector<2x64xf32>
    %333 = arith.addf %331, %332 : vector<2x64xf32>
    %cst_120 = arith.constant 0.000000e+00 : f32
    %334 = vector.broadcast %cst_120 : f32 to vector<2x64xf32>
    %335 = arith.maximumf %333, %334 : vector<2x64xf32>
    %c0_121 = arith.constant 0 : index
    %c0_122 = arith.constant 0 : index
    %336 = vector.load %arg13[%c0_121, %c0_122] : memref<64x128xf32, #tpu.memory_space<vmem>>, vector<64x128xf32>
    %cst_123 = arith.constant dense<0.000000e+00> : vector<2x128xf32>
    %337 = tpu.matmul %335, %336, %cst_123 {dimension_numbers = #tpu.dot_dimension_numbers<[1], [0], [0], [1], [0, 0, 1, 1], [], []>} : vector<2x64xf32>, vector<64x128xf32>, vector<2x128xf32> -> vector<2x128xf32>
    %338 = vector.broadcast %308 : vector<1x128xf32> to vector<2x128xf32>
    %339 = arith.addf %337, %338 : vector<2x128xf32>
    %c0_124 = arith.constant 0 : index
    %c0_125 = arith.constant 0 : index
    %340 = vector.load %arg15[%c0_124, %c0_125] : memref<2x128xf32, #tpu.memory_space<vmem>>, vector<2x128xf32>
    tpu.vector_store %arg15[%c0_124, %c0_125], %339 {strides = array<i32>} : memref<2x128xf32, #tpu.memory_space<vmem>>, vector<2x128xf32>,
    return
  }
}

</mosaic_0001>

<llo_original>
// kernel: mul.8
$region0: #{mul.8}
  %s0 = inlined_call_operand.vmem [shape: f32[2,8], index: 0, kind: input, shape index: {}]
  %s1 = inlined_call_operand.vmem [shape: f32[16], index: 1, kind: output, shape index: {}]
  $region1: #{mul.8} parent=0
    #allocation0 [shape = 'u8[4096]{0}', space=vmem, size = 0x1000, scoped, tag = 'scoped mem for output reshape']
    #allocation1 [shape = 'u8[4096]{0}', space=vmem, size = 0x1000, scoped, tag = 'scoped mem for input reshape']
    %s3 = ssub.s32 4, 1
    %v4 = vld [vmem:[%s0] sm:%s3]
    %5 = vst [vmem:[#allocation1] sm:%s3] %v4
    %v6 = vld [vmem:[#allocation1] sm:$0x1]
    %vm7 = vcmask 64512
    %8 = vst.msk [vmem:[#allocation0] sm:$0x1] %vm7, %v6
    %s9 = scalar_lea.vmem [#allocation1], 1
    %v10 = vld [vmem:[%s9] sm:$0x1]
    %11 = vrot.lane.b32.xlu0 %v10, 8
    %v12 = vpop.permute.xlu0 %11
    %vm13 = vcmask 130112
    %14 = vst.msk [vmem:[#allocation0] sm:$0x1] %vm13, %v12
    %s16 = ssub.s32 2, 1
    %v17 = vld [vmem:[#allocation0] sm:%s16]
    %s19 = ssub.s32 2, 1
    %20 = vst [vmem:[%s1] sm:%s19] %v17

// kernel: forward.1
$region0: #{forward.1}
  #allocation0 [shape = 'u32[]', space=smem, size = 0x4, offset = 0x4, fixed_abs, tag = 'smem constant byte address 0x4 - core index']
  #allocation1 [shape = 'u32[72,128]{1,0:T(1,128)}', space=vmem, size = 0x9000, scoped, tag = 'internal scratch']
  #allocation2 [shape = 'f32[16,32]{1,0:T(8,128)}', space=vmem, size = 0x2000, scoped, tag = 'scratch operand']
  %s0 = inlined_call_operand.vmem [shape: s32[16,1], index: 0, kind: input, shape index: {}]
  %s1 = inlined_call_operand.vmem [shape: f32[16,32], index: 1, kind: input, shape index: {}]
  %s2 = inlined_call_operand.vmem [shape: f32[16,16], index: 2, kind: input, shape index: {}]
  %s3 = inlined_call_operand.vmem [shape: f32[2,128], index: 3, kind: input, shape index: {}]
  %s4 = inlined_call_operand.vmem [shape: f32[50,32], index: 4, kind: input, shape index: {}]
  %s5 = inlined_call_operand.vmem [shape: f32[2,32,96], index: 5, kind: input, shape index: {}]
  %s6 = inlined_call_operand.vmem [shape: f32[2,32,32], index: 6, kind: input, shape index: {}]
  %s7 = inlined_call_operand.vmem [shape: f32[2,32,64], index: 7, kind: input, shape index: {}]
  %s8 = inlined_call_operand.vmem [shape: f32[2,64,32], index: 8, kind: input, shape index: {}]
  %s9 = inlined_call_operand.vmem [shape: f32[2,8,128], index: 9, kind: input, shape index: {}]
  %s10 = inlined_call_operand.vmem [shape: f32[32,128], index: 10, kind: input, shape index: {}]
  %s11 = inlined_call_operand.vmem [shape: f32[128,128], index: 11, kind: input, shape index: {}]
  %s12 = inlined_call_operand.vmem [shape: f32[128,64], index: 12, kind: input, shape index: {}]
  %s13 = inlined_call_operand.hbm [shape: f32[64,128], index: 13, kind: input, shape index: {}]
  %s14 = inlined_call_operand.vmem [shape: f32[9,128], index: 14, kind: input, shape index: {}]
  %s15 = inlined_call_operand.vmem [shape: f32[2,128], index: 15, kind: output, shape index: {}]
  %s16 = sld [smem:[#allocation0]]
  $region74: #{forward.1} parent=0
    _
  %s18 = ssub.s32 1, %s16
  %s19 = scalar_select 0, %s18, %s16
  $region1: #{forward.1} parent=0
    #allocation3 [shape = 'u8[32768]{0}', space=vmem, size = 0x8000, scoped, tag = 'input window, operand 13, single buffered']
    #allocation4 [shape = 's32[1]{0}', space=sflag, size = 0x4, scoped, tag = 'scoped memory for forward.1']
    %20 = vsyncpa [#allocation4], 0
    // Predicated region
    $region2: #{forward.1} parent=1 // pred_check
      _
    $region3: #{forward.1} parent=1 // pred_check_branch
      %22 = sbr.rel (0) target = $region5
    $region4: #{forward.1} parent=1 // pred_region
      _
    $region5: #{forward.1} parent=1 // pred_fallthru
      _
    // Predicated region
    $region6: #{forward.1} parent=1 // pred_check
      _
    $region7: #{forward.1} parent=1 // pred_check_branch
      %24 = sbr.rel (0) target = $region9
    $region8: #{forward.1} parent=1 // pred_region
      _
    $region9: #{forward.1} parent=1 // pred_fallthru
      _
    // Predicated region
    $region10: #{forward.1} parent=1 // pred_check
      _
    $region11: #{forward.1} parent=1 // pred_check_branch
      %26 = sbr.rel (0) target = $region13
    $region12: #{forward.1} parent=1 // pred_region
      _
    $region13: #{forward.1} parent=1 // pred_fallthru
      _
    // Predicated region
    $region14: #{forward.1} parent=1 // pred_check
      _
    $region15: #{forward.1} parent=1 // pred_check_branch
      %28 = sbr.rel (0) target = $region17
    $region16: #{forward.1} parent=1 // pred_region
      _
    $region17: #{forward.1} parent=1 // pred_fallthru
      _
    // Predicated region
    $region18: #{forward.1} parent=1 // pred_check
      _
    $region19: #{forward.1} parent=1 // pred_check_branch
      %30 = sbr.rel (0) target = $region21
    $region20: #{forward.1} parent=1 // pred_region
      _
    $region21: #{forward.1} parent=1 // pred_fallthru
      _
    // Predicated region
    $region22: #{forward.1} parent=1 // pred_check
      _
    $region23: #{forward.1} parent=1 // pred_check_branch
      %32 = sbr.rel (0) target = $region25
    $region24: #{forward.1} parent=1 // pred_region
      _
    $region25: #{forward.1} parent=1 // pred_fallthru
      _
    // Predicated region
    $region26: #{forward.1} parent=1 // pred_check
      _
    $region27: #{forward.1} parent=1 // pred_check_branch
      %34 = sbr.rel (0) target = $region29
    $region28: #{forward.1} parent=1 // pred_region
      _
    $region29: #{forward.1} parent=1 // pred_fallthru
      _
    // Predicated region
    $region30: #{forward.1} parent=1 // pred_check
      _
    $region31: #{forward.1} parent=1 // pred_check_branch
      %36 = sbr.rel (0) target = $region33
    $region32: #{forward.1} parent=1 // pred_region
      _
    $region33: #{forward.1} parent=1 // pred_fallthru
      _
    // Predicated region
    $region34: #{forward.1} parent=1 // pred_check
      _
    $region35: #{forward.1} parent=1 // pred_check_branch
      %38 = sbr.rel (0) target = $region37
    $region36: #{forward.1} parent=1 // pred_region
      _
    $region37: #{forward.1} parent=1 // pred_fallthru
      _
    // Predicated region
    $region38: #{forward.1} parent=1 // pred_check
      _
    $region39: #{forward.1} parent=1 // pred_check_branch
      %40 = sbr.rel (0) target = $region41
    $region40: #{forward.1} parent=1 // pred_region
      _
    $region41: #{forward.1} parent=1 // pred_fallthru
      _
    // Predicated region
    $region42: #{forward.1} parent=1 // pred_check
      _
    $region43: #{forward.1} parent=1 // pred_check_branch
      %42 = sbr.rel (0) target = $region45
    $region44: #{forward.1} parent=1 // pred_region
      _
    $region45: #{forward.1} parent=1 // pred_fallthru
      _
    // Predicated region
    $region46: #{forward.1} parent=1 // pred_check
      _
    $region47: #{forward.1} parent=1 // pred_check_branch
      %44 = sbr.rel (0) target = $region49
    $region48: #{forward.1} parent=1 // pred_region
      _
    $region49: #{forward.1} parent=1 // pred_fallthru
      _
    // Predicated region
    $region50: #{forward.1} parent=1 // pred_check
      _
    $region51: #{forward.1} parent=1 // pred_check_branch
      %46 = sbr.rel (0) target = $region53
    $region52: #{forward.1} parent=1 // pred_region
      _
    $region53: #{forward.1} parent=1 // pred_fallthru
      _
    // Predicated region
    $region54: #{forward.1} parent=1 // pred_check
      _
    $region55: #{forward.1} parent=1 // pred_check_branch
      %48 = sbr.rel (0) target = $region57
    $region56: #{forward.1} parent=1 // pred_region
      %50 = vsyncadd [#allocation4], 0
      %s51 = sshll.u32 %s13, 4
      %s52 = int_to_ptr.hbm [resolvable:$true] %s51
      %s53 = sshll.u32 [#allocation3], 4
      %s54 = int_to_ptr.vmem [resolvable:$true] %s53
      %59 = dma.hbm_to_vmem [thread:$0]  %s52, 1024, %s54, [#allocation4], 128, 128, 8
    $region57: #{forward.1} parent=1 // pred_fallthru
      _
    // Predicated region
    $region58: #{forward.1} parent=1 // pred_check
      _
    $region59: #{forward.1} parent=1 // pred_check_branch
      %61 = sbr.rel (0) target = $region61
    $region60: #{forward.1} parent=1 // pred_region
      _
    $region61: #{forward.1} parent=1 // pred_fallthru
      _
    // Predicated region
    $region62: #{forward.1} parent=1 // pred_check
      _
    $region63: #{forward.1} parent=1 // pred_check_branch
      %63 = sbr.rel (0) target = $region65
    $region64: #{forward.1} parent=1 // pred_region
      %65 = dma.done [#allocation4], 1024
    $region65: #{forward.1} parent=1 // pred_fallthru
      _
    %v66 = vld [vmem:[%s14] sm:$0xff]
    %v67 = vld [vmem:[%s14 + $0x8] sm:$0x1]
    %v68 = vld [vmem:[%s0] sm:$0xff]
    %v69 = vld [vmem:[%s0 + $0x8] sm:$0xff]
    %v70 = vlaneseq
    %v71 = vand.u32 %v70, 127
    %72 = vset.pattern.permute.xlu0 0
    %73 = vperm.xlu0 %72, %v68
    %v74 = vpop.permute.xlu0 %73
    %75 = vset.pattern.permute.xlu0 0
    %76 = vperm.xlu0 %75, %v69
    %v77 = vpop.permute.xlu0 %76
    %vm78 = vcmp.eq.s32.totalorder %v71, %v74
    %vm79 = vcmp.eq.s32.totalorder %v71, %v77
    %v80 = vsel %vm78, 1, 0
    %v81 = vsel %vm79, 1, 0
    %v82 = vcvt.s32.f32 %v80
    %v83 = vcvt.s32.f32 %v81
    %v84 = vld [vmem:[%s4] sm:$0xff]
    %v85 = vld [vmem:[%s4 + $0x8] sm:$0xff]
    %v86 = vld [vmem:[%s4 + $0x10] sm:$0xff]
    %v87 = vld [vmem:[%s4 + $0x18] sm:$0xff]
    %v88 = vld [vmem:[%s4 + $0x20] sm:$0xff]
    %v89 = vld [vmem:[%s4 + $0x28] sm:$0xff]
    %v90 = vld [vmem:[%s4 + $0x30] sm:$0x3]
    %v91 = vld [vmem:[%s1] sm:$0xff]
    %v92 = vld [vmem:[%s1 + $0x8] sm:$0xff]
    %vm93 = vcmask 408576
    %v95 = vsel %vm93, %v82, 0
    %v98 = vsel %vm93, %v83, 0
    %vm100 = vcmask 1041408
    %v102 = vsel %vm100, %v90, 0
    %104 = vmatpush.msra.mxu0 0.0
    %105 = vmatpush.msra.mxu0 0.0
    %106 = vmatpush.msra.mxu0 0.0
    %107 = vmatpush.msra.mxu0 0.0
    %108 = vmatpush.msra.mxu0 0.0
    %109 = vmatpush.msra.mxu0 0.0
    %110 = vmatpush.msra.mxu0 0.0
    %111 = vmatpush.msra.mxu0 0.0
    %112 = vmatpush.msra.mxu0 0.0
    %113 = vmatpush.msra.mxu0 %v102
    %114 = vmatpush.msra.mxu0 %v89
    %115 = vmatpush.msra.mxu0 %v88
    %116 = vmatpush.msra.mxu0 %v87
    %117 = vmatpush.msra.mxu0 %v86
    %118 = vmatpush.msra.mxu0 %v85
    %119 = vmatpush.msra.mxu0 %v84
    %120 = vmatmul.f32.gmra.mxu0 %v95
    %v121 = vpop.f32.mrf.mxu0
    %v122 = vadd.f32 %v91, %v121
    %123 = vmatmul.f32.gmra.mxu0 %v98
    %v124 = vpop.f32.mrf.mxu0
    %v125 = vadd.f32 %v92, %v124
    %126 = vdwg.mxu0
    %vm127 = vcmask 261120
    %v128 = vsel %vm127, %v122, 0.0
    %129 = vadd.xlane.f32.xlu0 %v128
    %v130 = vpop.xlane.xlu0 %129
    %v131 = vsel %vm127, %v125, 0.0
    %132 = vadd.xlane.f32.xlu0 %v131
    %v133 = vpop.xlane.xlu0 %132
    %v134 = vrcp.pop 32.0
    %v135 = vmul.f32 32.0, %v134
    %v136 = vsub.f32 1.0, %v135
    %v137 = vmul.f32 %v134, %v136
    %v138 = vadd.f32 %v134, %v137
    %vm139 = vweird.f32 %v134
    %v140 = vsel %vm139, %v134, %v138
    %v141 = vmul.f32 %v130, %v140
    %v142 = vmul.f32 %v133, %v140
    %v143 = vmul.f32 %v122, %v122
    %v144 = vmul.f32 %v125, %v125
    %v145 = vsel %vm127, %v143, 0.0
    %146 = vadd.xlane.f32.xlu0 %v145
    %v147 = vpop.xlane.xlu0 %146
    %v148 = vsel %vm127, %v144, 0.0
    %149 = vadd.xlane.f32.xlu0 %v148
    %v150 = vpop.xlane.xlu0 %149
    %v151 = vmul.f32 %v147, %v140
    %v152 = vmul.f32 %v150, %v140
    %v153 = vmul.f32 %v141, %v141
    %v154 = vmul.f32 %v142, %v142
    %v155 = vsub.f32 %v151, %v153
    %v156 = vsub.f32 %v152, %v154
    %v157 = vsub.f32 %v122, %v141
    %v158 = vsub.f32 %v125, %v142
    %v159 = vadd.f32 %v155, 1e-12
    %v160 = vadd.f32 %v156, 1e-12
    %v161 = vrsqrt.pop %v159
    %v162 = vmul.f32 %v161, %v159
    %v163 = vmul.f32 %v162, %v161
    %v164 = vmul.f32 0.5, %v163
    %v165 = vsub.f32 1.5, %v164
    %v166 = vmul.f32 %v161, %v165
    %vm167 = vweird.f32 %v159
    %vm168 = vweird.f32 %v161
    %vm169 = vmor %vm167, %vm168
    %v170 = vsel %vm169, %v161, %v166
    %v171 = vrsqrt.pop %v160
    %v172 = vmul.f32 %v171, %v160
    %v173 = vmul.f32 %v172, %v171
    %v174 = vmul.f32 0.5, %v173
    %v175 = vsub.f32 1.5, %v174
    %v176 = vmul.f32 %v171, %v175
    %vm177 = vweird.f32 %v160
    %vm178 = vweird.f32 %v171
    %vm179 = vmor %vm177, %vm178
    %v180 = vsel %vm179, %v171, %v176
    %v181 = vmul.f32 %v157, %v170
    %v182 = vmul.f32 %v158, %v180
    %v183 = vperm.slane %v66, 0
    %v184 = vmul.f32 %v181, %v183
    %v185 = vmul.f32 %v182, %v183
    %v186 = vperm.slane %v66, 1
    %v187 = vadd.f32 %v184, %v186
    %v188 = vadd.f32 %v185, %v186
    %v189 = vld [vmem:[%s2] sm:$0xff]
    %v190 = vld [vmem:[%s2 + $0x8] sm:$0xff]
    %v191 = vld [vmem:[%s9] sm:$0xff]
    %v192 = vld [vmem:[%s5] sm:$0xff]
    %v193 = vld [vmem:[%s5 + $0x8] sm:$0xff]
    %v194 = vld [vmem:[%s5 + $0x10] sm:$0xff]
    %v195 = vld [vmem:[%s5 + $0x18] sm:$0xff]
    %v196 = vperm.slane %v191, 0
    %v198 = vsel %vm127, %v187, 0
    %v201 = vsel %vm127, %v188, 0
    %203 = vmatpush.msra.mxu0 0.0
    %204 = vmatpush.msra.mxu0 0.0
    %205 = vmatpush.msra.mxu0 0.0
    %206 = vmatpush.msra.mxu0 0.0
    %207 = vmatpush.msra.mxu0 0.0
    %208 = vmatpush.msra.mxu0 0.0
    %209 = vmatpush.msra.mxu0 0.0
    %210 = vmatpush.msra.mxu0 0.0
    %211 = vmatpush.msra.mxu0 0.0
    %212 = vmatpush.msra.mxu0 0.0
    %213 = vmatpush.msra.mxu0 0.0
    %214 = vmatpush.msra.mxu0 0.0
    %215 = vmatpush.msra.mxu0 %v195
    %216 = vmatpush.msra.mxu0 %v194
    %217 = vmatpush.msra.mxu0 %v193
    %218 = vmatpush.msra.mxu0 %v192
    %219 = vmatmul.f32.gmra.mxu0 %v198
    %v220 = vpop.f32.mrf.mxu0
    %v221 = vadd.f32 %v196, %v220
    %222 = vmatmul.f32.gmra.mxu0 %v201
    %v223 = vpop.f32.mrf.mxu0
    %v224 = vadd.f32 %v196, %v223
    %225 = vdwg.mxu0
    %228 = vrot.lane.b32.xlu0 %v221, 96
    %v229 = vpop.permute.xlu0 %228
    %230 = vrot.lane.b32.xlu0 %v224, 96
    %v231 = vpop.permute.xlu0 %230
    %vm232 = vcmask 130048
    %v233 = vsel %vm232, %v221, 0
    %v235 = vsel %vm232, %v224, 0
    %v237 = vsel %vm232, %v229, 0
    %v239 = vsel %vm232, %v231, 0
    %241 = vmatpush.xpose.msra.mxu0 0.0
    %242 = vmatpush.xpose.msra.mxu0 0.0
    %243 = vmatpush.xpose.msra.mxu0 0.0
    %244 = vmatpush.xpose.msra.mxu0 0.0
    %245 = vmatpush.xpose.msra.mxu0 0.0
    %246 = vmatpush.xpose.msra.mxu0 0.0
    %247 = vmatpush.xpose.msra.mxu0 0.0
    %248 = vmatpush.xpose.msra.mxu0 0.0
    %249 = vmatpush.xpose.msra.mxu0 0.0
    %250 = vmatpush.xpose.msra.mxu0 0.0
    %251 = vmatpush.xpose.msra.mxu0 0.0
    %252 = vmatpush.xpose.msra.mxu0 0.0
    %253 = vmatpush.xpose.msra.mxu0 0.0
    %254 = vmatpush.xpose.msra.mxu0 0.0
    %255 = vmatpush.xpose.msra.mxu0 %v239
    %256 = vmatpush.xpose.msra.mxu0 %v237
    %257 = vmatmul.f32.gmra.mxu0 %v233
    %v258 = vpop.f32.mrf.mxu0
    %v259 = vadd.f32 %v189, %v258
    %260 = vmatmul.f32.gmra.mxu0 %v235
    %v261 = vpop.f32.mrf.mxu0
    %v262 = vadd.f32 %v190, %v261
    %263 = vdwg.mxu0
    %v264 = vsel %vm232, %v259, -inf
    %265 = vmax.xlane.f32.xlu0 %v264
    %v266 = vpop.xlane.xlu0 %265
    %v267 = vsel %vm232, %v262, -inf
    %268 = vmax.xlane.f32.xlu0 %v267
    %v269 = vpop.xlane.xlu0 %268
    %v270 = vsub.f32 %v259, %v266
    %v271 = vsub.f32 %v262, %v269
    %v272 = vmul.f32 %v270, 1.442695
    %v273 = vpow.pop %v272
    %v274 = vmul.f32 %v271, 1.442695
    %v275 = vpow.pop %v274
    %v276 = vsel %vm232, %v273, 0.0
    %277 = vadd.xlane.f32.xlu0 %v276
    %v278 = vpop.xlane.xlu0 %277
    %v279 = vsel %vm232, %v275, 0.0
    %280 = vadd.xlane.f32.xlu0 %v279
    %v281 = vpop.xlane.xlu0 %280
    %v282 = vrcp.pop %v278
    %v283 = vrcp.pop %v281
    %v284 = vmul.f32 %v273, %v282
    %v285 = vmul.f32 %v275, %v283
    %286 = vrot.lane.b32.xlu0 %v221, 64
    %v287 = vpop.permute.xlu0 %286
    %288 = vrot.lane.b32.xlu0 %v224, 64
    %v289 = vpop.permute.xlu0 %288
    %v293 = vsel %vm232, %v284, 0
    %v296 = vsel %vm232, %v285, 0
    %298 = vmatpush.msra.mxu0 0.0
    %299 = vmatpush.msra.mxu0 0.0
    %300 = vmatpush.msra.mxu0 0.0
    %301 = vmatpush.msra.mxu0 0.0
    %302 = vmatpush.msra.mxu0 0.0
    %303 = vmatpush.msra.mxu0 0.0
    %304 = vmatpush.msra.mxu0 0.0
    %305 = vmatpush.msra.mxu0 0.0
    %306 = vmatpush.msra.mxu0 0.0
    %307 = vmatpush.msra.mxu0 0.0
    %308 = vmatpush.msra.mxu0 0.0
    %309 = vmatpush.msra.mxu0 0.0
    %310 = vmatpush.msra.mxu0 0.0
    %311 = vmatpush.msra.mxu0 0.0
    %312 = vmatpush.msra.mxu0 %v289
    %313 = vmatpush.msra.mxu0 %v287
    %314 = vmatmul.f32.gmra.mxu0 %v293
    %v315 = vpop.f32.mrf.mxu0
    %v316 = vadd.f32 0.0, %v315
    %317 = vmatmul.f32.gmra.mxu0 %v296
    %v318 = vpop.f32.mrf.mxu0
    %v319 = vadd.f32 0.0, %v318
    %320 = vdwg.mxu0
    %321 = vst.msk [vmem:[#allocation2] sm:$0xff] %vm232, %v316
    %322 = vst.msk [vmem:[#allocation2 + $0x8] sm:$0xff] %vm232, %v319
    %323 = vrot.lane.b32.xlu0 %v221, 112
    %v324 = vpop.permute.xlu0 %323
    %325 = vrot.lane.b32.xlu0 %v224, 112
    %v326 = vpop.permute.xlu0 %325
    %327 = vrot.lane.b32.xlu0 %v221, 80
    %v328 = vpop.permute.xlu0 %327
    %329 = vrot.lane.b32.xlu0 %v224, 80
    %v330 = vpop.permute.xlu0 %329
    %v331 = vsel %vm232, %v324, 0
    %v333 = vsel %vm232, %v326, 0
    %v335 = vsel %vm232, %v328, 0
    %v337 = vsel %vm232, %v330, 0
    %339 = vmatpush.xpose.msra.mxu0 0.0
    %340 = vmatpush.xpose.msra.mxu0 0.0
    %341 = vmatpush.xpose.msra.mxu0 0.0
    %342 = vmatpush.xpose.msra.mxu0 0.0
    %343 = vmatpush.xpose.msra.mxu0 0.0
    %344 = vmatpush.xpose.msra.mxu0 0.0
    %345 = vmatpush.xpose.msra.mxu0 0.0
    %346 = vmatpush.xpose.msra.mxu0 0.0
    %347 = vmatpush.xpose.msra.mxu0 0.0
    %348 = vmatpush.xpose.msra.mxu0 0.0
    %349 = vmatpush.xpose.msra.mxu0 0.0
    %350 = vmatpush.xpose.msra.mxu0 0.0
    %351 = vmatpush.xpose.msra.mxu0 0.0
    %352 = vmatpush.xpose.msra.mxu0 0.0
    %353 = vmatpush.xpose.msra.mxu0 %v337
    %354 = vmatpush.xpose.msra.mxu0 %v335
    %355 = vmatmul.f32.gmra.mxu0 %v331
    %v356 = vpop.f32.mrf.mxu0
    %v357 = vadd.f32 %v189, %v356
    %358 = vmatmul.f32.gmra.mxu0 %v333
    %v359 = vpop.f32.mrf.mxu0
    %v360 = vadd.f32 %v190, %v359
    %361 = vdwg.mxu0
    %v362 = vsel %vm232, %v357, -inf
    %363 = vmax.xlane.f32.xlu0 %v362
    %v364 = vpop.xlane.xlu0 %363
    %v365 = vsel %vm232, %v360, -inf
    %366 = vmax.xlane.f32.xlu0 %v365
    %v367 = vpop.xlane.xlu0 %366
    %v368 = vsub.f32 %v357, %v364
    %v369 = vsub.f32 %v360, %v367
    %v370 = vmul.f32 %v368, 1.442695
    %v371 = vpow.pop %v370
    %v372 = vmul.f32 %v369, 1.442695
    %v373 = vpow.pop %v372
    %v374 = vsel %vm232, %v371, 0.0
    %375 = vadd.xlane.f32.xlu0 %v374
    %v376 = vpop.xlane.xlu0 %375
    %v377 = vsel %vm232, %v373, 0.0
    %378 = vadd.xlane.f32.xlu0 %v377
    %v379 = vpop.xlane.xlu0 %378
    %v380 = vrcp.pop %v376
    %v381 = vrcp.pop %v379
    %v382 = vmul.f32 %v371, %v380
    %v383 = vmul.f32 %v373, %v381
    %384 = vrot.lane.b32.xlu0 %v221, 48
    %v385 = vpop.permute.xlu0 %384
    %386 = vrot.lane.b32.xlu0 %v224, 48
    %v387 = vpop.permute.xlu0 %386
    %v391 = vsel %vm232, %v382, 0
    %v394 = vsel %vm232, %v383, 0
    %396 = vmatpush.msra.mxu0 0.0
    %397 = vmatpush.msra.mxu0 0.0
    %398 = vmatpush.msra.mxu0 0.0
    %399 = vmatpush.msra.mxu0 0.0
    %400 = vmatpush.msra.mxu0 0.0
    %401 = vmatpush.msra.mxu0 0.0
    %402 = vmatpush.msra.mxu0 0.0
    %403 = vmatpush.msra.mxu0 0.0
    %404 = vmatpush.msra.mxu0 0.0
    %405 = vmatpush.msra.mxu0 0.0
    %406 = vmatpush.msra.mxu0 0.0
    %407 = vmatpush.msra.mxu0 0.0
    %408 = vmatpush.msra.mxu0 0.0
    %409 = vmatpush.msra.mxu0 0.0
    %410 = vmatpush.msra.mxu0 %v387
    %411 = vmatpush.msra.mxu0 %v385
    %412 = vmatmul.f32.gmra.mxu0 %v391
    %v413 = vpop.f32.mrf.mxu0
    %v414 = vadd.f32 0.0, %v413
    %415 = vmatmul.f32.gmra.mxu0 %v394
    %v416 = vpop.f32.mrf.mxu0
    %v417 = vadd.f32 0.0, %v416
    %418 = vdwg.mxu0
    %421 = vrot.lane.b32.xlu0 %v414, 16
    %v422 = vpop.permute.xlu0 %421
    %423 = vrot.lane.b32.xlu0 %v417, 16
    %v424 = vpop.permute.xlu0 %423
    %vm427 = vcmask 261248
    %428 = vst.msk [vmem:[#allocation2] sm:$0xff] %vm427, %v422
    %429 = vst.msk [vmem:[#allocation2 + $0x8] sm:$0xff] %vm427, %v424
    %v430 = vld [vmem:[#allocation2] sm:$0xff]
    %v431 = vld [vmem:[#allocation2 + $0x8] sm:$0xff]
    %v432 = vld [vmem:[%s6] sm:$0xff]
    %v433 = vld [vmem:[%s6 + $0x8] sm:$0xff]
    %v434 = vld [vmem:[%s6 + $0x10] sm:$0xff]
    %v435 = vld [vmem:[%s6 + $0x18] sm:$0xff]
    %v436 = vperm.slane %v191, 1
    %v438 = vsel %vm127, %v430, 0
    %v441 = vsel %vm127, %v431, 0
    %443 = vmatpush.msra.mxu0 0.0
    %444 = vmatpush.msra.mxu0 0.0
    %445 = vmatpush.msra.mxu0 0.0
    %446 = vmatpush.msra.mxu0 0.0
    %447 = vmatpush.msra.mxu0 0.0
    %448 = vmatpush.msra.mxu0 0.0
    %449 = vmatpush.msra.mxu0 0.0
    %450 = vmatpush.msra.mxu0 0.0
    %451 = vmatpush.msra.mxu0 0.0
    %452 = vmatpush.msra.mxu0 0.0
    %453 = vmatpush.msra.mxu0 0.0
    %454 = vmatpush.msra.mxu0 0.0
    %455 = vmatpush.msra.mxu0 %v435
    %456 = vmatpush.msra.mxu0 %v434
    %457 = vmatpush.msra.mxu0 %v433
    %458 = vmatpush.msra.mxu0 %v432
    %459 = vmatmul.f32.gmra.mxu0 %v438
    %v460 = vpop.f32.mrf.mxu0
    %v461 = vadd.f32 %v436, %v460
    %462 = vmatmul.f32.gmra.mxu0 %v441
    %v463 = vpop.f32.mrf.mxu0
    %v464 = vadd.f32 %v436, %v463
    %465 = vdwg.mxu0
    %v466 = vadd.f32 %v187, %v461
    %v467 = vadd.f32 %v188, %v464
    %v468 = vsel %vm127, %v466, 0.0
    %469 = vadd.xlane.f32.xlu0 %v468
    %v470 = vpop.xlane.xlu0 %469
    %v471 = vsel %vm127, %v467, 0.0
    %472 = vadd.xlane.f32.xlu0 %v471
    %v473 = vpop.xlane.xlu0 %472
    %v474 = vmul.f32 %v470, %v140
    %v475 = vmul.f32 %v473, %v140
    %v476 = vmul.f32 %v466, %v466
    %v477 = vmul.f32 %v467, %v467
    %v478 = vsel %vm127, %v476, 0.0
    %479 = vadd.xlane.f32.xlu0 %v478
    %v480 = vpop.xlane.xlu0 %479
    %v481 = vsel %vm127, %v477, 0.0
    %482 = vadd.xlane.f32.xlu0 %v481
    %v483 = vpop.xlane.xlu0 %482
    %v484 = vmul.f32 %v480, %v140
    %v485 = vmul.f32 %v483, %v140
    %v486 = vmul.f32 %v474, %v474
    %v487 = vmul.f32 %v475, %v475
    %v488 = vsub.f32 %v484, %v486
    %v489 = vsub.f32 %v485, %v487
    %v490 = vsub.f32 %v466, %v474
    %v491 = vsub.f32 %v467, %v475
    %v492 = vadd.f32 %v488, 1e-12
    %v493 = vadd.f32 %v489, 1e-12
    %v494 = vrsqrt.pop %v492
    %v495 = vmul.f32 %v494, %v492
    %v496 = vmul.f32 %v495, %v494
    %v497 = vmul.f32 0.5, %v496
    %v498 = vsub.f32 1.5, %v497
    %v499 = vmul.f32 %v494, %v498
    %vm500 = vweird.f32 %v492
    %vm501 = vweird.f32 %v494
    %vm502 = vmor %vm500, %vm501
    %v503 = vsel %vm502, %v494, %v499
    %v504 = vrsqrt.pop %v493
    %v505 = vmul.f32 %v504, %v493
    %v506 = vmul.f32 %v505, %v504
    %v507 = vmul.f32 0.5, %v506
    %v508 = vsub.f32 1.5, %v507
    %v509 = vmul.f32 %v504, %v508
    %vm510 = vweird.f32 %v493
    %vm511 = vweird.f32 %v504
    %vm512 = vmor %vm510, %vm511
    %v513 = vsel %vm512, %v504, %v509
    %v514 = vmul.f32 %v490, %v503
    %v515 = vmul.f32 %v491, %v513
    %v516 = vperm.slane %v191, 2
    %v517 = vmul.f32 %v514, %v516
    %v518 = vmul.f32 %v515, %v516
    %v519 = vperm.slane %v191, 3
    %v520 = vadd.f32 %v517, %v519
    %v521 = vadd.f32 %v518, %v519
    %v522 = vld [vmem:[%s7] sm:$0xff]
    %v523 = vld [vmem:[%s7 + $0x8] sm:$0xff]
    %v524 = vld [vmem:[%s7 + $0x10] sm:$0xff]
    %v525 = vld [vmem:[%s7 + $0x18] sm:$0xff]
    %v526 = vperm.slane %v191, 4
    %v528 = vsel %vm127, %v520, 0
    %v531 = vsel %vm127, %v521, 0
    %533 = vmatpush.msra.mxu0 0.0
    %534 = vmatpush.msra.mxu0 0.0
    %535 = vmatpush.msra.mxu0 0.0
    %536 = vmatpush.msra.mxu0 0.0
    %537 = vmatpush.msra.mxu0 0.0
    %538 = vmatpush.msra.mxu0 0.0
    %539 = vmatpush.msra.mxu0 0.0
    %540 = vmatpush.msra.mxu0 0.0
    %541 = vmatpush.msra.mxu0 0.0
    %542 = vmatpush.msra.mxu0 0.0
    %543 = vmatpush.msra.mxu0 0.0
    %544 = vmatpush.msra.mxu0 0.0
    %545 = vmatpush.msra.mxu0 %v525
    %546 = vmatpush.msra.mxu0 %v524
    %547 = vmatpush.msra.mxu0 %v523
    %548 = vmatpush.msra.mxu0 %v522
    %549 = vmatmul.f32.gmra.mxu0 %v528
    %v550 = vpop.f32.mrf.mxu0
    %v551 = vadd.f32 %v526, %v550
    %552 = vmatmul.f32.gmra.mxu0 %v531
    %v553 = vpop.f32.mrf.mxu0
    %v554 = vadd.f32 %v526, %v553
    %555 = vdwg.mxu0
    %v556 = vmul.f32 %v551, 0.5
    %v557 = vmul.f32 %v554, 0.5
    %v558 = vmul.f32 %v551, 0.044715
    %v559 = vmul.f32 %v554, 0.044715
    %v560 = vmul.f32 %v558, %v551
    %v561 = vmul.f32 %v559, %v554
    %v562 = vmul.f32 %v560, %v551
    %v563 = vmul.f32 %v561, %v554
    %v564 = vadd.f32 %v551, %v562
    %v565 = vadd.f32 %v554, %v563
    %v566 = vmul.f32 %v564, 0.7978846
    %v567 = vmul.f32 %v565, 0.7978846
    %v568 = vtanh.pop %v566
    %v569 = vtanh.pop %v567
    %v570 = vadd.f32 %v568, 1.0
    %v571 = vadd.f32 %v569, 1.0
    %v572 = vmul.f32 %v556, %v570
    %v573 = vmul.f32 %v557, %v571
    %v574 = vld [vmem:[%s8] sm:$0xff]
    %v575 = vld [vmem:[%s8 + $0x8] sm:$0xff]
    %v576 = vld [vmem:[%s8 + $0x10] sm:$0xff]
    %v577 = vld [vmem:[%s8 + $0x18] sm:$0xff]
    %v578 = vld [vmem:[%s8 + $0x20] sm:$0xff]
    %v579 = vld [vmem:[%s8 + $0x28] sm:$0xff]
    %v580 = vld [vmem:[%s8 + $0x30] sm:$0xff]
    %v581 = vld [vmem:[%s8 + $0x38] sm:$0xff]
    %v582 = vperm.slane %v191, 5
    %vm583 = vcmask 523264
    %v585 = vsel %vm583, %v572, 0
    %v588 = vsel %vm583, %v573, 0
    %590 = vmatpush.msra.mxu0 0.0
    %591 = vmatpush.msra.mxu0 0.0
    %592 = vmatpush.msra.mxu0 0.0
    %593 = vmatpush.msra.mxu0 0.0
    %594 = vmatpush.msra.mxu0 0.0
    %595 = vmatpush.msra.mxu0 0.0
    %596 = vmatpush.msra.mxu0 0.0
    %597 = vmatpush.msra.mxu0 0.0
    %598 = vmatpush.msra.mxu0 %v581
    %599 = vmatpush.msra.mxu0 %v580
    %600 = vmatpush.msra.mxu0 %v579
    %601 = vmatpush.msra.mxu0 %v578
    %602 = vmatpush.msra.mxu0 %v577
    %603 = vmatpush.msra.mxu0 %v576
    %604 = vmatpush.msra.mxu0 %v575
    %605 = vmatpush.msra.mxu0 %v574
    %606 = vmatmul.f32.gmra.mxu0 %v585
    %v607 = vpop.f32.mrf.mxu0
    %v608 = vadd.f32 %v582, %v607
    %609 = vmatmul.f32.gmra.mxu0 %v588
    %v610 = vpop.f32.mrf.mxu0
    %v611 = vadd.f32 %v582, %v610
    %612 = vdwg.mxu0
    %v613 = vadd.f32 %v520, %v608
    %v614 = vadd.f32 %v521, %v611
    %v615 = vsel %vm127, %v613, 0.0
    %616 = vadd.xlane.f32.xlu0 %v615
    %v617 = vpop.xlane.xlu0 %616
    %v618 = vsel %vm127, %v614, 0.0
    %619 = vadd.xlane.f32.xlu0 %v618
    %v620 = vpop.xlane.xlu0 %619
    %v621 = vmul.f32 %v617, %v140
    %v622 = vmul.f32 %v620, %v140
    %v623 = vmul.f32 %v613, %v613
    %v624 = vmul.f32 %v614, %v614
    %v625 = vsel %vm127, %v623, 0.0
    %626 = vadd.xlane.f32.xlu0 %v625
    %v627 = vpop.xlane.xlu0 %626
    %v628 = vsel %vm127, %v624, 0.0
    %629 = vadd.xlane.f32.xlu0 %v628
    %v630 = vpop.xlane.xlu0 %629
    %v631 = vmul.f32 %v627, %v140
    %v632 = vmul.f32 %v630, %v140
    %v633 = vmul.f32 %v621, %v621
    %v634 = vmul.f32 %v622, %v622
    %v635 = vsub.f32 %v631, %v633
    %v636 = vsub.f32 %v632, %v634
    %v637 = vsub.f32 %v613, %v621
    %v638 = vsub.f32 %v614, %v622
    %v639 = vadd.f32 %v635, 1e-12
    %v640 = vadd.f32 %v636, 1e-12
    %v641 = vrsqrt.pop %v639
    %v642 = vmul.f32 %v641, %v639
    %v643 = vmul.f32 %v642, %v641
    %v644 = vmul.f32 0.5, %v643
    %v645 = vsub.f32 1.5, %v644
    %v646 = vmul.f32 %v641, %v645
    %vm647 = vweird.f32 %v639
    %vm648 = vweird.f32 %v641
    %vm649 = vmor %vm647, %vm648
    %v650 = vsel %vm649, %v641, %v646
    %v651 = vrsqrt.pop %v640
    %v652 = vmul.f32 %v651, %v640
    %v653 = vmul.f32 %v652, %v651
    %v654 = vmul.f32 0.5, %v653
    %v655 = vsub.f32 1.5, %v654
    %v656 = vmul.f32 %v651, %v655
    %vm657 = vweird.f32 %v640
    %vm658 = vweird.f32 %v651
    %vm659 = vmor %vm657, %vm658
    %v660 = vsel %vm659, %v651, %v656
    %v661 = vmul.f32 %v637, %v650
    %v662 = vmul.f32 %v638, %v660
    %v663 = vperm.slane %v191, 6
    %v664 = vmul.f32 %v661, %v663
    %v665 = vmul.f32 %v662, %v663
    %v666 = vperm.slane %v191, 7
    %v667 = vadd.f32 %v664, %v666
    %v668 = vadd.f32 %v665, %v666
    %s669 = scalar_lea.vmem %s9, 8
    %v670 = vld [vmem:[%s669] sm:$0xff]
    %s671 = scalar_lea.vmem %s5, 32
    %v672 = vld [vmem:[%s671] sm:$0xff]
    %v673 = vld [vmem:[%s671 + $0x8] sm:$0xff]
    %v674 = vld [vmem:[%s671 + $0x10] sm:$0xff]
    %v675 = vld [vmem:[%s671 + $0x18] sm:$0xff]
    %v676 = vperm.slane %v670, 0
    %v678 = vsel %vm127, %v667, 0
    %v681 = vsel %vm127, %v668, 0
    %683 = vmatpush.msra.mxu0 0.0
    %684 = vmatpush.msra.mxu0 0.0
    %685 = vmatpush.msra.mxu0 0.0
    %686 = vmatpush.msra.mxu0 0.0
    %687 = vmatpush.msra.mxu0 0.0
    %688 = vmatpush.msra.mxu0 0.0
    %689 = vmatpush.msra.mxu0 0.0
    %690 = vmatpush.msra.mxu0 0.0
    %691 = vmatpush.msra.mxu0 0.0
    %692 = vmatpush.msra.mxu0 0.0
    %693 = vmatpush.msra.mxu0 0.0
    %694 = vmatpush.msra.mxu0 0.0
    %695 = vmatpush.msra.mxu0 %v675
    %696 = vmatpush.msra.mxu0 %v674
    %697 = vmatpush.msra.mxu0 %v673
    %698 = vmatpush.msra.mxu0 %v672
    %699 = vmatmul.f32.gmra.mxu0 %v678
    %v700 = vpop.f32.mrf.mxu0
    %v701 = vadd.f32 %v676, %v700
    %702 = vmatmul.f32.gmra.mxu0 %v681
    %v703 = vpop.f32.mrf.mxu0
    %v704 = vadd.f32 %v676, %v703
    %705 = vdwg.mxu0
    %708 = vrot.lane.b32.xlu0 %v701, 96
    %v709 = vpop.permute.xlu0 %708
    %710 = vrot.lane.b32.xlu0 %v704, 96
    %v711 = vpop.permute.xlu0 %710
    %v712 = vsel %vm232, %v701, 0
    %v714 = vsel %vm232, %v704, 0
    %v716 = vsel %vm232, %v709, 0
    %v718 = vsel %vm232, %v711, 0
    %720 = vmatpush.xpose.msra.mxu0 0.0
    %721 = vmatpush.xpose.msra.mxu0 0.0
    %722 = vmatpush.xpose.msra.mxu0 0.0
    %723 = vmatpush.xpose.msra.mxu0 0.0
    %724 = vmatpush.xpose.msra.mxu0 0.0
    %725 = vmatpush.xpose.msra.mxu0 0.0
    %726 = vmatpush.xpose.msra.mxu0 0.0
    %727 = vmatpush.xpose.msra.mxu0 0.0
    %728 = vmatpush.xpose.msra.mxu0 0.0
    %729 = vmatpush.xpose.msra.mxu0 0.0
    %730 = vmatpush.xpose.msra.mxu0 0.0
    %731 = vmatpush.xpose.msra.mxu0 0.0
    %732 = vmatpush.xpose.msra.mxu0 0.0
    %733 = vmatpush.xpose.msra.mxu0 0.0
    %734 = vmatpush.xpose.msra.mxu0 %v718
    %735 = vmatpush.xpose.msra.mxu0 %v716
    %736 = vmatmul.f32.gmra.mxu0 %v712
    %v737 = vpop.f32.mrf.mxu0
    %v738 = vadd.f32 %v189, %v737
    %739 = vmatmul.f32.gmra.mxu0 %v714
    %v740 = vpop.f32.mrf.mxu0
    %v741 = vadd.f32 %v190, %v740
    %742 = vdwg.mxu0
    %v743 = vsel %vm232, %v738, -inf
    %744 = vmax.xlane.f32.xlu0 %v743
    %v745 = vpop.xlane.xlu0 %744
    %v746 = vsel %vm232, %v741, -inf
    %747 = vmax.xlane.f32.xlu0 %v746
    %v748 = vpop.xlane.xlu0 %747
    %v749 = vsub.f32 %v738, %v745
    %v750 = vsub.f32 %v741, %v748
    %v751 = vmul.f32 %v749, 1.442695
    %v752 = vpow.pop %v751
    %v753 = vmul.f32 %v750, 1.442695
    %v754 = vpow.pop %v753
    %v755 = vsel %vm232, %v752, 0.0
    %756 = vadd.xlane.f32.xlu0 %v755
    %v757 = vpop.xlane.xlu0 %756
    %v758 = vsel %vm232, %v754, 0.0
    %759 = vadd.xlane.f32.xlu0 %v758
    %v760 = vpop.xlane.xlu0 %759
    %v761 = vrcp.pop %v757
    %v762 = vrcp.pop %v760
    %v763 = vmul.f32 %v752, %v761
    %v764 = vmul.f32 %v754, %v762
    %765 = vrot.lane.b32.xlu0 %v701, 64
    %v766 = vpop.permute.xlu0 %765
    %767 = vrot.lane.b32.xlu0 %v704, 64
    %v768 = vpop.permute.xlu0 %767
    %v772 = vsel %vm232, %v763, 0
    %v775 = vsel %vm232, %v764, 0
    %777 = vmatpush.msra.mxu0 0.0
    %778 = vmatpush.msra.mxu0 0.0
    %779 = vmatpush.msra.mxu0 0.0
    %780 = vmatpush.msra.mxu0 0.0
    %781 = vmatpush.msra.mxu0 0.0
    %782 = vmatpush.msra.mxu0 0.0
    %783 = vmatpush.msra.mxu0 0.0
    %784 = vmatpush.msra.mxu0 0.0
    %785 = vmatpush.msra.mxu0 0.0
    %786 = vmatpush.msra.mxu0 0.0
    %787 = vmatpush.msra.mxu0 0.0
    %788 = vmatpush.msra.mxu0 0.0
    %789 = vmatpush.msra.mxu0 0.0
    %790 = vmatpush.msra.mxu0 0.0
    %791 = vmatpush.msra.mxu0 %v768
    %792 = vmatpush.msra.mxu0 %v766
    %793 = vmatmul.f32.gmra.mxu0 %v772
    %v794 = vpop.f32.mrf.mxu0
    %v795 = vadd.f32 0.0, %v794
    %796 = vmatmul.f32.gmra.mxu0 %v775
    %v797 = vpop.f32.mrf.mxu0
    %v798 = vadd.f32 0.0, %v797
    %799 = vdwg.mxu0
    %800 = vst.msk [vmem:[#allocation2] sm:$0xff] %vm232, %v795
    %801 = vst.msk [vmem:[#allocation2 + $0x8] sm:$0xff] %vm232, %v798
    %802 = vrot.lane.b32.xlu0 %v701, 112
    %v803 = vpop.permute.xlu0 %802
    %804 = vrot.lane.b32.xlu0 %v704, 112
    %v805 = vpop.permute.xlu0 %804
    %806 = vrot.lane.b32.xlu0 %v701, 80
    %v807 = vpop.permute.xlu0 %806
    %808 = vrot.lane.b32.xlu0 %v704, 80
    %v809 = vpop.permute.xlu0 %808
    %v810 = vsel %vm232, %v803, 0
    %v812 = vsel %vm232, %v805, 0
    %v814 = vsel %vm232, %v807, 0
    %v816 = vsel %vm232, %v809, 0
    %818 = vmatpush.xpose.msra.mxu0 0.0
    %819 = vmatpush.xpose.msra.mxu0 0.0
    %820 = vmatpush.xpose.msra.mxu0 0.0
    %821 = vmatpush.xpose.msra.mxu0 0.0
    %822 = vmatpush.xpose.msra.mxu0 0.0
    %823 = vmatpush.xpose.msra.mxu0 0.0
    %824 = vmatpush.xpose.msra.mxu0 0.0
    %825 = vmatpush.xpose.msra.mxu0 0.0
    %826 = vmatpush.xpose.msra.mxu0 0.0
    %827 = vmatpush.xpose.msra.mxu0 0.0
    %828 = vmatpush.xpose.msra.mxu0 0.0
    %829 = vmatpush.xpose.msra.mxu0 0.0
    %830 = vmatpush.xpose.msra.mxu0 0.0
    %831 = vmatpush.xpose.msra.mxu0 0.0
    %832 = vmatpush.xpose.msra.mxu0 %v816
    %833 = vmatpush.xpose.msra.mxu0 %v814
    %834 = vmatmul.f32.gmra.mxu0 %v810
    %v835 = vpop.f32.mrf.mxu0
    %v836 = vadd.f32 %v189, %v835
    %837 = vmatmul.f32.gmra.mxu0 %v812
    %v838 = vpop.f32.mrf.mxu0
    %v839 = vadd.f32 %v190, %v838
    %840 = vdwg.mxu0
    %v841 = vsel %vm232, %v836, -inf
    %842 = vmax.xlane.f32.xlu0 %v841
    %v843 = vpop.xlane.xlu0 %842
    %v844 = vsel %vm232, %v839, -inf
    %845 = vmax.xlane.f32.xlu0 %v844
    %v846 = vpop.xlane.xlu0 %845
    %v847 = vsub.f32 %v836, %v843
    %v848 = vsub.f32 %v839, %v846
    %v849 = vmul.f32 %v847, 1.442695
    %v850 = vpow.pop %v849
    %v851 = vmul.f32 %v848, 1.442695
    %v852 = vpow.pop %v851
    %v853 = vsel %vm232, %v850, 0.0
    %854 = vadd.xlane.f32.xlu0 %v853
    %v855 = vpop.xlane.xlu0 %854
    %v856 = vsel %vm232, %v852, 0.0
    %857 = vadd.xlane.f32.xlu0 %v856
    %v858 = vpop.xlane.xlu0 %857
    %v859 = vrcp.pop %v855
    %v860 = vrcp.pop %v858
    %v861 = vmul.f32 %v850, %v859
    %v862 = vmul.f32 %v852, %v860
    %863 = vrot.lane.b32.xlu0 %v701, 48
    %v864 = vpop.permute.xlu0 %863
    %865 = vrot.lane.b32.xlu0 %v704, 48
    %v866 = vpop.permute.xlu0 %865
    %v870 = vsel %vm232, %v861, 0
    %v873 = vsel %vm232, %v862, 0
    %875 = vmatpush.msra.mxu0 0.0
    %876 = vmatpush.msra.mxu0 0.0
    %877 = vmatpush.msra.mxu0 0.0
    %878 = vmatpush.msra.mxu0 0.0
    %879 = vmatpush.msra.mxu0 0.0
    %880 = vmatpush.msra.mxu0 0.0
    %881 = vmatpush.msra.mxu0 0.0
    %882 = vmatpush.msra.mxu0 0.0
    %883 = vmatpush.msra.mxu0 0.0
    %884 = vmatpush.msra.mxu0 0.0
    %885 = vmatpush.msra.mxu0 0.0
    %886 = vmatpush.msra.mxu0 0.0
    %887 = vmatpush.msra.mxu0 0.0
    %888 = vmatpush.msra.mxu0 0.0
    %889 = vmatpush.msra.mxu0 %v866
    %890 = vmatpush.msra.mxu0 %v864
    %891 = vmatmul.f32.gmra.mxu0 %v870
    %v892 = vpop.f32.mrf.mxu0
    %v893 = vadd.f32 0.0, %v892
    %894 = vmatmul.f32.gmra.mxu0 %v873
    %v895 = vpop.f32.mrf.mxu0
    %v896 = vadd.f32 0.0, %v895
    %897 = vdwg.mxu0
    %900 = vrot.lane.b32.xlu0 %v893, 16
    %v901 = vpop.permute.xlu0 %900
    %902 = vrot.lane.b32.xlu0 %v896, 16
    %v903 = vpop.permute.xlu0 %902
    %906 = vst.msk [vmem:[#allocation2] sm:$0xff] %vm427, %v901
    %907 = vst.msk [vmem:[#allocation2 + $0x8] sm:$0xff] %vm427, %v903
    %v908 = vld [vmem:[#allocation2] sm:$0xff]
    %v909 = vld [vmem:[#allocation2 + $0x8] sm:$0xff]
    %s910 = scalar_lea.vmem %s6, 32
    %v911 = vld [vmem:[%s910] sm:$0xff]
    %v912 = vld [vmem:[%s910 + $0x8] sm:$0xff]
    %v913 = vld [vmem:[%s910 + $0x10] sm:$0xff]
    %v914 = vld [vmem:[%s910 + $0x18] sm:$0xff]
    %v915 = vperm.slane %v670, 1
    %v917 = vsel %vm127, %v908, 0
    %v920 = vsel %vm127, %v909, 0
    %922 = vmatpush.msra.mxu0 0.0
    %923 = vmatpush.msra.mxu0 0.0
    %924 = vmatpush.msra.mxu0 0.0
    %925 = vmatpush.msra.mxu0 0.0
    %926 = vmatpush.msra.mxu0 0.0
    %927 = vmatpush.msra.mxu0 0.0
    %928 = vmatpush.msra.mxu0 0.0
    %929 = vmatpush.msra.mxu0 0.0
    %930 = vmatpush.msra.mxu0 0.0
    %931 = vmatpush.msra.mxu0 0.0
    %932 = vmatpush.msra.mxu0 0.0
    %933 = vmatpush.msra.mxu0 0.0
    %934 = vmatpush.msra.mxu0 %v914
    %935 = vmatpush.msra.mxu0 %v913
    %936 = vmatpush.msra.mxu0 %v912
    %937 = vmatpush.msra.mxu0 %v911
    %938 = vmatmul.f32.gmra.mxu0 %v917
    %v939 = vpop.f32.mrf.mxu0
    %v940 = vadd.f32 %v915, %v939
    %941 = vmatmul.f32.gmra.mxu0 %v920
    %v942 = vpop.f32.mrf.mxu0
    %v943 = vadd.f32 %v915, %v942
    %944 = vdwg.mxu0
    %v945 = vadd.f32 %v667, %v940
    %v946 = vadd.f32 %v668, %v943
    %v947 = vsel %vm127, %v945, 0.0
    %948 = vadd.xlane.f32.xlu0 %v947
    %v949 = vpop.xlane.xlu0 %948
    %v950 = vsel %vm127, %v946, 0.0
    %951 = vadd.xlane.f32.xlu0 %v950
    %v952 = vpop.xlane.xlu0 %951
    %v953 = vmul.f32 %v949, %v140
    %v954 = vmul.f32 %v952, %v140
    %v955 = vmul.f32 %v945, %v945
    %v956 = vmul.f32 %v946, %v946
    %v957 = vsel %vm127, %v955, 0.0
    %958 = vadd.xlane.f32.xlu0 %v957
    %v959 = vpop.xlane.xlu0 %958
    %v960 = vsel %vm127, %v956, 0.0
    %961 = vadd.xlane.f32.xlu0 %v960
    %v962 = vpop.xlane.xlu0 %961
    %v963 = vmul.f32 %v959, %v140
    %v964 = vmul.f32 %v962, %v140
    %v965 = vmul.f32 %v953, %v953
    %v966 = vmul.f32 %v954, %v954
    %v967 = vsub.f32 %v963, %v965
    %v968 = vsub.f32 %v964, %v966
    %v969 = vsub.f32 %v945, %v953
    %v970 = vsub.f32 %v946, %v954
    %v971 = vadd.f32 %v967, 1e-12
    %v972 = vadd.f32 %v968, 1e-12
    %v973 = vrsqrt.pop %v971
    %v974 = vmul.f32 %v973, %v971
    %v975 = vmul.f32 %v974, %v973
    %v976 = vmul.f32 0.5, %v975
    %v977 = vsub.f32 1.5, %v976
    %v978 = vmul.f32 %v973, %v977
    %vm979 = vweird.f32 %v971
    %vm980 = vweird.f32 %v973
    %vm981 = vmor %vm979, %vm980
    %v982 = vsel %vm981, %v973, %v978
    %v983 = vrsqrt.pop %v972
    %v984 = vmul.f32 %v983, %v972
    %v985 = vmul.f32 %v984, %v983
    %v986 = vmul.f32 0.5, %v985
    %v987 = vsub.f32 1.5, %v986
    %v988 = vmul.f32 %v983, %v987
    %vm989 = vweird.f32 %v972
    %vm990 = vweird.f32 %v983
    %vm991 = vmor %vm989, %vm990
    %v992 = vsel %vm991, %v983, %v988
    %v993 = vmul.f32 %v969, %v982
    %v994 = vmul.f32 %v970, %v992
    %v995 = vperm.slane %v670, 2
    %v996 = vmul.f32 %v993, %v995
    %v997 = vmul.f32 %v994, %v995
    %v998 = vperm.slane %v670, 3
    %v999 = vadd.f32 %v996, %v998
    %v1000 = vadd.f32 %v997, %v998
    %s1001 = scalar_lea.vmem %s7, 32
    %v1002 = vld [vmem:[%s1001] sm:$0xff]
    %v1003 = vld [vmem:[%s1001 + $0x8] sm:$0xff]
    %v1004 = vld [vmem:[%s1001 + $0x10] sm:$0xff]
    %v1005 = vld [vmem:[%s1001 + $0x18] sm:$0xff]
    %v1006 = vperm.slane %v670, 4
    %v1008 = vsel %vm127, %v999, 0
    %v1011 = vsel %vm127, %v1000, 0
    %1013 = vmatpush.msra.mxu0 0.0
    %1014 = vmatpush.msra.mxu0 0.0
    %1015 = vmatpush.msra.mxu0 0.0
    %1016 = vmatpush.msra.mxu0 0.0
    %1017 = vmatpush.msra.mxu0 0.0
    %1018 = vmatpush.msra.mxu0 0.0
    %1019 = vmatpush.msra.mxu0 0.0
    %1020 = vmatpush.msra.mxu0 0.0
    %1021 = vmatpush.msra.mxu0 0.0
    %1022 = vmatpush.msra.mxu0 0.0
    %1023 = vmatpush.msra.mxu0 0.0
    %1024 = vmatpush.msra.mxu0 0.0
    %1025 = vmatpush.msra.mxu0 %v1005
    %1026 = vmatpush.msra.mxu0 %v1004
    %1027 = vmatpush.msra.mxu0 %v1003
    %1028 = vmatpush.msra.mxu0 %v1002
    %1029 = vmatmul.f32.gmra.mxu0 %v1008
    %v1030 = vpop.f32.mrf.mxu0
    %v1031 = vadd.f32 %v1006, %v1030
    %1032 = vmatmul.f32.gmra.mxu0 %v1011
    %v1033 = vpop.f32.mrf.mxu0
    %v1034 = vadd.f32 %v1006, %v1033
    %1035 = vdwg.mxu0
    %v1036 = vmul.f32 %v1031, 0.5
    %v1037 = vmul.f32 %v1034, 0.5
    %v1038 = vmul.f32 %v1031, 0.044715
    %v1039 = vmul.f32 %v1034, 0.044715
    %v1040 = vmul.f32 %v1038, %v1031
    %v1041 = vmul.f32 %v1039, %v1034
    %v1042 = vmul.f32 %v1040, %v1031
    %v1043 = vmul.f32 %v1041, %v1034
    %v1044 = vadd.f32 %v1031, %v1042
    %v1045 = vadd.f32 %v1034, %v1043
    %v1046 = vmul.f32 %v1044, 0.7978846
    %v1047 = vmul.f32 %v1045, 0.7978846
    %v1048 = vtanh.pop %v1046
    %v1049 = vtanh.pop %v1047
    %v1050 = vadd.f32 %v1048, 1.0
    %v1051 = vadd.f32 %v1049, 1.0
    %v1052 = vmul.f32 %v1036, %v1050
    %v1053 = vmul.f32 %v1037, %v1051
    %s1054 = scalar_lea.vmem %s8, 64
    %v1055 = vld [vmem:[%s1054] sm:$0xff]
    %v1056 = vld [vmem:[%s1054 + $0x8] sm:$0xff]
    %v1057 = vld [vmem:[%s1054 + $0x10] sm:$0xff]
    %v1058 = vld [vmem:[%s1054 + $0x18] sm:$0xff]
    %v1059 = vld [vmem:[%s1054 + $0x20] sm:$0xff]
    %v1060 = vld [vmem:[%s1054 + $0x28] sm:$0xff]
    %v1061 = vld [vmem:[%s1054 + $0x30] sm:$0xff]
    %v1062 = vld [vmem:[%s1054 + $0x38] sm:$0xff]
    %v1063 = vperm.slane %v670, 5
    %v1065 = vsel %vm583, %v1052, 0
    %v1068 = vsel %vm583, %v1053, 0
    %1070 = vmatpush.msra.mxu0 0.0
    %1071 = vmatpush.msra.mxu0 0.0
    %1072 = vmatpush.msra.mxu0 0.0
    %1073 = vmatpush.msra.mxu0 0.0
    %1074 = vmatpush.msra.mxu0 0.0
    %1075 = vmatpush.msra.mxu0 0.0
    %1076 = vmatpush.msra.mxu0 0.0
    %1077 = vmatpush.msra.mxu0 0.0
    %1078 = vmatpush.msra.mxu0 %v1062
    %1079 = vmatpush.msra.mxu0 %v1061
    %1080 = vmatpush.msra.mxu0 %v1060
    %1081 = vmatpush.msra.mxu0 %v1059
    %1082 = vmatpush.msra.mxu0 %v1058
    %1083 = vmatpush.msra.mxu0 %v1057
    %1084 = vmatpush.msra.mxu0 %v1056
    %1085 = vmatpush.msra.mxu0 %v1055
    %1086 = vmatmul.f32.gmra.mxu0 %v1065
    %v1087 = vpop.f32.mrf.mxu0
    %v1088 = vadd.f32 %v1063, %v1087
    %1089 = vmatmul.f32.gmra.mxu0 %v1068
    %v1090 = vpop.f32.mrf.mxu0
    %v1091 = vadd.f32 %v1063, %v1090
    %1092 = vdwg.mxu0
    %v1093 = vadd.f32 %v999, %v1088
    %v1094 = vadd.f32 %v1000, %v1091
    %v1095 = vsel %vm127, %v1093, 0.0
    %1096 = vadd.xlane.f32.xlu0 %v1095
    %v1097 = vpop.xlane.xlu0 %1096
    %v1098 = vsel %vm127, %v1094, 0.0
    %1099 = vadd.xlane.f32.xlu0 %v1098
    %v1100 = vpop.xlane.xlu0 %1099
    %v1101 = vmul.f32 %v1097, %v140
    %v1102 = vmul.f32 %v1100, %v140
    %v1103 = vmul.f32 %v1093, %v1093
    %v1104 = vmul.f32 %v1094, %v1094
    %v1105 = vsel %vm127, %v1103, 0.0
    %1106 = vadd.xlane.f32.xlu0 %v1105
    %v1107 = vpop.xlane.xlu0 %1106
    %v1108 = vsel %vm127, %v1104, 0.0
    %1109 = vadd.xlane.f32.xlu0 %v1108
    %v1110 = vpop.xlane.xlu0 %1109
    %v1111 = vmul.f32 %v1107, %v140
    %v1112 = vmul.f32 %v1110, %v140
    %v1113 = vmul.f32 %v1101, %v1101
    %v1114 = vmul.f32 %v1102, %v1102
    %v1115 = vsub.f32 %v1111, %v1113
    %v1116 = vsub.f32 %v1112, %v1114
    %v1117 = vsub.f32 %v1093, %v1101
    %v1118 = vsub.f32 %v1094, %v1102
    %v1119 = vadd.f32 %v1115, 1e-12
    %v1120 = vadd.f32 %v1116, 1e-12
    %v1121 = vrsqrt.pop %v1119
    %v1122 = vmul.f32 %v1121, %v1119
    %v1123 = vmul.f32 %v1122, %v1121
    %v1124 = vmul.f32 0.5, %v1123
    %v1125 = vsub.f32 1.5, %v1124
    %v1126 = vmul.f32 %v1121, %v1125
    %vm1127 = vweird.f32 %v1119
    %vm1128 = vweird.f32 %v1121
    %vm1129 = vmor %vm1127, %vm1128
    %v1130 = vsel %vm1129, %v1121, %v1126
    %v1131 = vrsqrt.pop %v1120
    %v1132 = vmul.f32 %v1131, %v1120
    %v1133 = vmul.f32 %v1132, %v1131
    %v1134 = vmul.f32 0.5, %v1133
    %v1135 = vsub.f32 1.5, %v1134
    %v1136 = vmul.f32 %v1131, %v1135
    %vm1137 = vweird.f32 %v1120
    %vm1138 = vweird.f32 %v1131
    %vm1139 = vmor %vm1137, %vm1138
    %v1140 = vsel %vm1139, %v1131, %v1136
    %v1141 = vmul.f32 %v1117, %v1130
    %v1142 = vmul.f32 %v1118, %v1140
    %v1143 = vperm.slane %v670, 6
    %v1144 = vmul.f32 %v1141, %v1143
    %v1145 = vmul.f32 %v1142, %v1143
    %v1146 = vperm.slane %v670, 7
    %v1147 = vadd.f32 %v1144, %v1146
    %v1148 = vadd.f32 %v1145, %v1146
    %v1149 = vlaneseq
    %v1150 = vshrl.u32 %v1149, 7
    %v1151 = vmul.u32 %v1150, 8
    %vm1152 = vcmp.eq.s32.totalorder %v71, %v1151
    %v1153 = vsel %vm1152, 1, 0
    %v1154 = vcvt.s32.f32 %v1153
    %v1156 = vsel %vm232, %v1154, 0
    %1158 = vmatpush.msra.mxu0 0.0
    %1159 = vmatpush.msra.mxu0 0.0
    %1160 = vmatpush.msra.mxu0 0.0
    %1161 = vmatpush.msra.mxu0 0.0
    %1162 = vmatpush.msra.mxu0 0.0
    %1163 = vmatpush.msra.mxu0 0.0
    %1164 = vmatpush.msra.mxu0 0.0
    %1165 = vmatpush.msra.mxu0 0.0
    %1166 = vmatpush.msra.mxu0 0.0
    %1167 = vmatpush.msra.mxu0 0.0
    %1168 = vmatpush.msra.mxu0 0.0
    %1169 = vmatpush.msra.mxu0 0.0
    %1170 = vmatpush.msra.mxu0 0.0
    %1171 = vmatpush.msra.mxu0 0.0
    %1172 = vmatpush.msra.mxu0 %v1148
    %1173 = vmatpush.msra.mxu0 %v1147
    %1174 = vmatmul.f32.gmra.mxu0 %v1156
    %v1175 = vpop.f32.mrf.mxu0
    %v1176 = vadd.f32 0.0, %v1175
    %1177 = vdwg.mxu0
    %v1178 = vld [vmem:[%s10] sm:$0xff]
    %v1179 = vld [vmem:[%s10 + $0x8] sm:$0xff]
    %v1180 = vld [vmem:[%s10 + $0x10] sm:$0xff]
    %v1181 = vld [vmem:[%s10 + $0x18] sm:$0xff]
    %v1182 = vld [vmem:[%s3] sm:$0x3]
    %v1183 = vld [vmem:[%s11] sm:$0xff]
    %v1184 = vld [vmem:[%s11 + $0x8] sm:$0xff]
    %v1185 = vld [vmem:[%s11 + $0x10] sm:$0xff]
    %v1186 = vld [vmem:[%s11 + $0x18] sm:$0xff]
    %v1187 = vld [vmem:[%s11 + $0x20] sm:$0xff]
    %v1188 = vld [vmem:[%s11 + $0x28] sm:$0xff]
    %v1189 = vld [vmem:[%s11 + $0x30] sm:$0xff]
    %v1190 = vld [vmem:[%s11 + $0x38] sm:$0xff]
    %v1191 = vld [vmem:[%s11 + $0x40] sm:$0xff]
    %v1192 = vld [vmem:[%s11 + $0x48] sm:$0xff]
    %v1193 = vld [vmem:[%s11 + $0x50] sm:$0xff]
    %v1194 = vld [vmem:[%s11 + $0x58] sm:$0xff]
    %v1195 = vld [vmem:[%s11 + $0x60] sm:$0xff]
    %v1196 = vld [vmem:[%s11 + $0x68] sm:$0xff]
    %v1197 = vld [vmem:[%s11 + $0x70] sm:$0xff]
    %v1198 = vld [vmem:[%s11 + $0x78] sm:$0xff]
    %1199 = vmatpush.msra.mxu0 %v1198
    %1200 = vmatpush.msra.mxu0 %v1197
    %1201 = vmatpush.msra.mxu0 %v1196
    %1202 = vmatpush.msra.mxu0 %v1195
    %1203 = vmatpush.msra.mxu0 %v1194
    %1204 = vmatpush.msra.mxu0 %v1193
    %1205 = vmatpush.msra.mxu0 %v1192
    %1206 = vmatpush.msra.mxu0 %v1191
    %1207 = vmatpush.msra.mxu0 %v1190
    %1208 = vmatpush.msra.mxu0 %v1189
    %1209 = vmatpush.msra.mxu0 %v1188
    %1210 = vmatpush.msra.mxu0 %v1187
    %1211 = vmatpush.msra.mxu0 %v1186
    %1212 = vmatpush.msra.mxu0 %v1185
    %1213 = vmatpush.msra.mxu0 %v1184
    %1214 = vmatpush.msra.mxu0 %v1183
    %1215 = vmatmul.f32.gmra.mxu0 %v1182
    %v1216 = vpop.f32.mrf.mxu0
    %v1217 = vadd.f32 0.0, %v1216
    %1218 = vdwg.mxu0
    %v1220 = vsel %vm127, %v1176, 0
    %1222 = vmatpush.msra.mxu0 0.0
    %1223 = vmatpush.msra.mxu0 0.0
    %1224 = vmatpush.msra.mxu0 0.0
    %1225 = vmatpush.msra.mxu0 0.0
    %1226 = vmatpush.msra.mxu0 0.0
    %1227 = vmatpush.msra.mxu0 0.0
    %1228 = vmatpush.msra.mxu0 0.0
    %1229 = vmatpush.msra.mxu0 0.0
    %1230 = vmatpush.msra.mxu0 0.0
    %1231 = vmatpush.msra.mxu0 0.0
    %1232 = vmatpush.msra.mxu0 0.0
    %1233 = vmatpush.msra.mxu0 0.0
    %1234 = vmatpush.msra.mxu0 %v1181
    %1235 = vmatpush.msra.mxu0 %v1180
    %1236 = vmatpush.msra.mxu0 %v1179
    %1237 = vmatpush.msra.mxu0 %v1178
    %1238 = vmatmul.f32.gmra.mxu0 %v1220
    %v1239 = vpop.f32.mrf.mxu0
    %v1240 = vadd.f32 %v1217, %v1239
    %1241 = vdwg.mxu0
    %v1242 = vperm.slane %v66, 2
    %v1243 = vadd.f32 %v1240, %v1242
    %v1244 = vperm.slane %v66, 5
    %v1245 = vsub.f32 %v1243, %v1244
    %v1246 = vadd.f32 %v66, 1e-05
    %v1247 = vrsqrt.pop %v1246
    %v1248 = vmul.f32 %v1247, %v1246
    %v1249 = vmul.f32 %v1248, %v1247
    %v1250 = vmul.f32 0.5, %v1249
    %v1251 = vsub.f32 1.5, %v1250
    %v1252 = vmul.f32 %v1247, %v1251
    %vm1253 = vweird.f32 %v1246
    %vm1254 = vweird.f32 %v1247
    %vm1255 = vmor %vm1253, %vm1254
    %v1256 = vsel %vm1255, %v1247, %v1252
    %v1257 = vperm.slane %v1256, 6
    %v1258 = vmul.f32 %v1245, %v1257
    %v1259 = vperm.slane %v66, 3
    %v1260 = vmul.f32 %v1258, %v1259
    %v1261 = vperm.slane %v66, 4
    %v1262 = vadd.f32 %v1260, %v1261
    %v1263 = vmax.f32 %v1262, 0.0
    %v1264 = vld [vmem:[%s12] sm:$0xff]
    %v1265 = vld [vmem:[%s12 + $0x8] sm:$0xff]
    %v1266 = vld [vmem:[%s12 + $0x10] sm:$0xff]
    %v1267 = vld [vmem:[%s12 + $0x18] sm:$0xff]
    %v1268 = vld [vmem:[%s12 + $0x20] sm:$0xff]
    %v1269 = vld [vmem:[%s12 + $0x28] sm:$0xff]
    %v1270 = vld [vmem:[%s12 + $0x30] sm:$0xff]
    %v1271 = vld [vmem:[%s12 + $0x38] sm:$0xff]
    %v1272 = vld [vmem:[%s12 + $0x40] sm:$0xff]
    %v1273 = vld [vmem:[%s12 + $0x48] sm:$0xff]
    %v1274 = vld [vmem:[%s12 + $0x50] sm:$0xff]
    %v1275 = vld [vmem:[%s12 + $0x58] sm:$0xff]
    %v1276 = vld [vmem:[%s12 + $0x60] sm:$0xff]
    %v1277 = vld [vmem:[%s12 + $0x68] sm:$0xff]
    %v1278 = vld [vmem:[%s12 + $0x70] sm:$0xff]
    %v1279 = vld [vmem:[%s12 + $0x78] sm:$0xff]
    %v1280 = vperm.slane %v66, 7
    %1281 = vmatpush.msra.mxu0 %v1279
    %1282 = vmatpush.msra.mxu0 %v1278
    %1283 = vmatpush.msra.mxu0 %v1277
    %1284 = vmatpush.msra.mxu0 %v1276
    %1285 = vmatpush.msra.mxu0 %v1275
    %1286 = vmatpush.msra.mxu0 %v1274
    %1287 = vmatpush.msra.mxu0 %v1273
    %1288 = vmatpush.msra.mxu0 %v1272
    %1289 = vmatpush.msra.mxu0 %v1271
    %1290 = vmatpush.msra.mxu0 %v1270
    %1291 = vmatpush.msra.mxu0 %v1269
    %1292 = vmatpush.msra.mxu0 %v1268
    %1293 = vmatpush.msra.mxu0 %v1267
    %1294 = vmatpush.msra.mxu0 %v1266
    %1295 = vmatpush.msra.mxu0 %v1265
    %1296 = vmatpush.msra.mxu0 %v1264
    %1297 = vmatmul.f32.gmra.mxu0 %v1263
    %v1298 = vpop.f32.mrf.mxu0
    %v1299 = vadd.f32 %v1280, %v1298
    %1300 = vdwg.mxu0
    %v1301 = vmax.f32 %v1299, 0.0
    %v1302 = vld [vmem:[#allocation3] sm:$0xff]
    %v1303 = vld [vmem:[#allocation3 + $0x8] sm:$0xff]
    %v1304 = vld [vmem:[#allocation3 + $0x10] sm:$0xff]
    %v1305 = vld [vmem:[#allocation3 + $0x18] sm:$0xff]
    %v1306 = vld [vmem:[#allocation3 + $0x20] sm:$0xff]
    %v1307 = vld [vmem:[#allocation3 + $0x28] sm:$0xff]
    %v1308 = vld [vmem:[#allocation3 + $0x30] sm:$0xff]
    %v1309 = vld [vmem:[#allocation3 + $0x38] sm:$0xff]
    %v1310 = vperm.slane %v67, 0
    %v1312 = vsel %vm583, %v1301, 0
    %1314 = vmatpush.msra.mxu0 0.0
    %1315 = vmatpush.msra.mxu0 0.0
    %1316 = vmatpush.msra.mxu0 0.0
    %1317 = vmatpush.msra.mxu0 0.0
    %1318 = vmatpush.msra.mxu0 0.0
    %1319 = vmatpush.msra.mxu0 0.0
    %1320 = vmatpush.msra.mxu0 0.0
    %1321 = vmatpush.msra.mxu0 0.0
    %1322 = vmatpush.msra.mxu0 %v1309
    %1323 = vmatpush.msra.mxu0 %v1308
    %1324 = vmatpush.msra.mxu0 %v1307
    %1325 = vmatpush.msra.mxu0 %v1306
    %1326 = vmatpush.msra.mxu0 %v1305
    %1327 = vmatpush.msra.mxu0 %v1304
    %1328 = vmatpush.msra.mxu0 %v1303
    %1329 = vmatpush.msra.mxu0 %v1302
    %1330 = vmatmul.f32.gmra.mxu0 %v1312
    %v1331 = vpop.f32.mrf.mxu0
    %v1332 = vadd.f32 %v1310, %v1331
    %1333 = vdwg.mxu0
    %1334 = vst [vmem:[%s15] sm:$0x3] %v1332
    // Predicated region
    $region66: #{forward.1} parent=1 // pred_check
      _
    $region67: #{forward.1} parent=1 // pred_check_branch
      %1336 = sbr.rel (0) target = $region69
    $region68: #{forward.1} parent=1 // pred_region
      _
    $region69: #{forward.1} parent=1 // pred_fallthru
      _
    // Predicated region
    $region70: #{forward.1} parent=1 // pred_check
      _
    $region71: #{forward.1} parent=1 // pred_check_branch
      %1338 = sbr.rel (0) target = $region73
    $region72: #{forward.1} parent=1 // pred_region
      _
    $region73: #{forward.1} parent=1 // pred_fallthru
      _
    %1339 = vsyncpa [#allocation4], 1

</llo_original>
